<compile_context>
chip_gen: v7x
topology: tpu7x:2x2x1
jax: 0.10.0
libtpu: 0.0.40
codegen_flags: <defaults>
</compile_context>

<pallas_src>
from functools import partial

import jax
import jax.numpy as jnp
from jax.experimental import pallas as pl
from jax.experimental.pallas import tpu as pltpu


def _make_head_kernel(B, HW, Bpad, Cpad):
    BHW = B * HW

    def kernel(x_ref, w1t_ref, w2t_ref, bias_ref, out_ref):
        # x: (B*HW, C) f32 backbone features — cast to bf16 here (VPU, free) instead of
        # materializing a separate bf16 copy in the wrapper.
        x = x_ref[...].astype(jnp.bfloat16)

        # Linear(1024->512) with the BatchNorm1d (eval) scale and the 1/(H*W) pooling
        # factor pre-folded into the weights (see prepare_head_params).
        h = jnp.dot(x, w1t_ref[...], preferred_element_type=jnp.float32)     # (BHW, L)

        # classifier Linear(L->class_num) applied BEFORE pooling (head is affine at
        # eval, so the order is exchangeable).  M=BHW keeps the MXU fed; w2t is bf16.
        z = jnp.dot(h.astype(jnp.bfloat16), w2t_ref[...],
                    preferred_element_type=jnp.float32)                      # (BHW, Cpad)

        # AdaptiveAvgPool2d((1,1)) == per-batch spatial group-sum (1/HW already folded
        # into w1t).  Done as an f32 MXU matmul against a block-ones selector: exact
        # f32 reduction, no XLU reshape-reduce, and a full (Bpad, Cpad) = (8, 128)
        # output tile -> unmasked stores.  Padded batch rows select nothing (zeros).
        row = jax.lax.broadcasted_iota(jnp.int32, (Bpad, BHW), 0)
        col = jax.lax.broadcasted_iota(jnp.int32, (Bpad, BHW), 1)
        sel = jnp.where((col >= row * HW) & (col < (row + 1) * HW),
                        1.0, 0.0).astype(jnp.float32)                        # (Bpad, BHW)
        pooled = jnp.dot(sel, z, preferred_element_type=jnp.float32)         # (Bpad, Cpad)

        # Folded bias = ((b1 - mean)*scale + beta) @ w2.T + b2.  Dropout(0.5) is
        # identity at eval.
        # TODO(synk): training-mode dropout / batch-stat BN not implemented.
        out_ref[...] = (pooled + bias_ref[...]).astype(out_ref.dtype)

    return kernel


def prepare_head_params(params, hw, class_num, compute_dtype=jnp.bfloat16, eps=1e-5):
    """One-off weight prep (f32 math, done once): fold BN scale + 1/HW into w1, push the
    Linear bias / BN shift through the classifier, transpose, lane-pad classes, cast."""
    scale = params["bn_gamma"] * jax.lax.rsqrt(params["bn_var"] + eps)        # (L,)
    # Effective first matmul: (x/HW) @ w1.T with the BN scale applied per output column.
    w1t = (params["w1"] * scale[:, None]).T / float(hw)                       # (C, L)
    b1_eff = (params["b1"] - params["bn_mean"]) * scale + params["bn_beta"]   # (L,)

    cpad = max(128, ((class_num + 127) // 128) * 128)
    w2t = jnp.pad(params["w2"].T, ((0, 0), (0, cpad - class_num)))            # (L, Cpad)
    # Bias folded through the classifier in full f32 precision.
    bias = jnp.pad(b1_eff @ params["w2"].T + params["b2"], (0, cpad - class_num))

    return dict(
        w1t=w1t.astype(compute_dtype),                # (C, L)    bf16
        w2t=w2t.astype(compute_dtype),                # (L, Cpad) bf16
        bias=bias[None, :].astype(jnp.float32),       # (1, Cpad) f32
    )


@partial(jax.jit, static_argnames=("class_num",))
def ft_net_swinv2_head(feats, prepped, *, class_num):
    """Pallas head over backbone NHWC features.

    Whole problem fits in VMEM at these shapes, so a single program (no grid) is used —
    per-step grid overhead (~0.35 us) would exceed the ~0.1 us of compute.
    TODO(synk): for realistic ReID batches (B >= 128) add an M-grid over rows in
    multiples of HW (weights full-extent in every block, axis "parallel") to bound VMEM
    and let v7x's two TensorCores split the batch.
    """
    B, H, W, C = feats.shape
    HW = H * W
    L = prepped["w1t"].shape[1]
    Cpad = prepped["w2t"].shape[1]
    Bpad = max(8, ((B + 7) // 8) * 8)

    # Metadata-only reshape; f32 features go straight into the kernel (cast inside).
    x = feats.reshape(B * HW, C)

    flops = 2 * (B * HW * C * L + B * HW * L * Cpad + Bpad * B * HW * Cpad)
    bytes_accessed = (B * HW * C * 4            # x (f32)
                      + C * L * 2 + L * Cpad * 2  # w1t, w2t (bf16)
                      + Cpad * 4                  # bias (f32)
                      + Bpad * Cpad * 4)          # out (f32)

    vmem = pl.BlockSpec(memory_space=pltpu.MemorySpace.VMEM)
    out = pl.pallas_call(
        _make_head_kernel(B, HW, Bpad, Cpad),
        out_shape=jax.ShapeDtypeStruct((Bpad, Cpad), jnp.float32),
        in_specs=[vmem] * 4,
        out_specs=vmem,
        cost_estimate=pl.CostEstimate(
            flops=flops, transcendentals=0, bytes_accessed=bytes_accessed),
    )(x, prepped["w1t"], prepped["w2t"], prepped["bias"])

    return out[:B, :class_num]


def init_params(key, input_dim=1024, linear=512, class_num=16):
    """Deterministic init mirroring weights_init_kaiming / weights_init_classifier."""
    k1, k2, k3 = jax.random.split(key, 3)
    # nn.Linear(input_dim, linear): kaiming_normal_(a=0, mode='fan_out') -> std = sqrt(2/out)
    w1 = jax.random.normal(k1, (linear, input_dim), jnp.float32) * jnp.sqrt(2.0 / linear)
    b1 = jnp.zeros((linear,), jnp.float32)
    # BatchNorm1d(linear): weight ~ N(1, 0.02), bias = 0, running stats = (0, 1)
    bn_gamma = 1.0 + 0.02 * jax.random.normal(k2, (linear,), jnp.float32)
    bn_beta = jnp.zeros((linear,), jnp.float32)
    bn_mean = jnp.zeros((linear,), jnp.float32)
    bn_var = jnp.ones((linear,), jnp.float32)
    # classifier nn.Linear(linear, class_num): weight ~ N(0, 0.001), bias = 0
    w2 = jax.random.normal(k3, (class_num, linear), jnp.float32) * 0.001
    b2 = jnp.zeros((class_num,), jnp.float32)
    return dict(w1=w1, b1=b1, bn_gamma=bn_gamma, bn_beta=bn_beta,
                bn_mean=bn_mean, bn_var=bn_var, w2=w2, b2=b2)


def _reference(feats, p):
    """Pure-JAX f32 reference of the same math, for a correctness check."""
    pooled = jnp.mean(feats, axis=(1, 2))
    y = pooled @ p["w1"].T + p["b1"]
    y = (y - p["bn_mean"]) / jnp.sqrt(p["bn_var"] + 1e-5) * p["bn_gamma"] + p["bn_beta"]
    return y @ p["w2"].T + p["b2"]


if __name__ == "__main__":
    key = jax.random.PRNGKey(0)
    k_feat, k_par = jax.random.split(key)

    # Module-consistent small shapes: swinv2_base on a (256, 128) image yields
    # NHWC features (B, 8, 4, 1024); feature dim 1024 kept faithful, tiny batch.
    B, H, W, C = 2, 8, 4, 1024
    LINEAR, CLASS_NUM = 512, 16

    feats = jax.random.normal(k_feat, (B, H, W, C), jnp.float32)
    params = init_params(k_par, input_dim=C, linear=LINEAR, class_num=CLASS_NUM)

    # One-off weight prep (fold BN + pool scale + biases, transpose, pad, cast to bf16).
    prepped = prepare_head_params(params, hw=H * W, class_num=CLASS_NUM)

    out = ft_net_swinv2_head(feats, prepped, class_num=CLASS_NUM)
    out = jax.block_until_ready(out)

    ref = _reference(feats, params)
    assert out.shape == (B, CLASS_NUM)
    # Tolerance loosened for bf16 weights/activations on the MXU (f32 accumulation).
    assert jnp.allclose(out, ref, atol=1e-2, rtol=1e-2)

    print("KERNEL_OK")
</pallas_src>

<mosaic_0001>
module attributes {stable_mosaic.version = 11 : i64} {
  func.func @kernel(%arg0: memref<64x1024xf32, #tpu.memory_space<vmem>>, %arg1: memref<1024x512xbf16, #tpu.memory_space<vmem>>, %arg2: memref<512x128xbf16, #tpu.memory_space<vmem>>, %arg3: memref<1x128xf32, #tpu.memory_space<vmem>>, %arg4: memref<8x128xf32, #tpu.memory_space<vmem>>) attributes {dimension_semantics = [], scalar_prefetch = 0 : i64, scratch_operands = 0 : i64, tpu.core_type = #tpu.core_type<tc>} {
    %c0 = arith.constant 0 : index
    %c0_0 = arith.constant 0 : index
    %0 = vector.load %arg0[%c0, %c0_0] : memref<64x1024xf32, #tpu.memory_space<vmem>>, vector<64x1024xf32>
    %1 = arith.truncf %0 : vector<64x1024xf32> to vector<64x1024xbf16>
    %c0_1 = arith.constant 0 : index
    %c0_2 = arith.constant 0 : index
    %2 = vector.load %arg1[%c0_1, %c0_2] : memref<1024x512xbf16, #tpu.memory_space<vmem>>, vector<1024x512xbf16>
    %cst = arith.constant dense<0.000000e+00> : vector<64x512xf32>
    %3 = tpu.matmul %1, %2, %cst {dimension_numbers = #tpu.dot_dimension_numbers<[1], [0], [0], [1], [0, 0, 1, 1], [], []>} : vector<64x1024xbf16>, vector<1024x512xbf16>, vector<64x512xf32> -> vector<64x512xf32>
    %4 = arith.truncf %3 : vector<64x512xf32> to vector<64x512xbf16>
    %c0_3 = arith.constant 0 : index
    %c0_4 = arith.constant 0 : index
    %5 = vector.load %arg2[%c0_3, %c0_4] : memref<512x128xbf16, #tpu.memory_space<vmem>>, vector<512x128xbf16>
    %cst_5 = arith.constant dense<0.000000e+00> : vector<64x128xf32>
    %6 = tpu.matmul %4, %5, %cst_5 {dimension_numbers = #tpu.dot_dimension_numbers<[1], [0], [0], [1], [0, 0, 1, 1], [], []>} : vector<64x512xbf16>, vector<512x128xbf16>, vector<64x128xf32> -> vector<64x128xf32>
    %7 = tpu.iota {dimensions = array<i32: 0>} : vector<8x64xi32>
    %8 = tpu.iota {dimensions = array<i32: 1>} : vector<8x64xi32>
    %c32_i32 = arith.constant 32 : i32
    %9 = vector.broadcast %c32_i32 : i32 to vector<8x64xi32>
    %10 = arith.muli %7, %9 : vector<8x64xi32>
    %11 = arith.cmpi sge, %8, %10 : vector<8x64xi32>
    %c1_i32 = arith.constant 1 : i32
    %12 = vector.broadcast %c1_i32 : i32 to vector<8x64xi32>
    %13 = arith.addi %7, %12 : vector<8x64xi32>
    %c32_i32_6 = arith.constant 32 : i32
    %14 = vector.broadcast %c32_i32_6 : i32 to vector<8x64xi32>
    %15 = arith.muli %13, %14 : vector<8x64xi32>
    %16 = arith.cmpi slt, %8, %15 : vector<8x64xi32>
    %17 = arith.andi %11, %16 : vector<8x64xi1>
    %cst_7 = arith.constant 1.000000e+00 : f32
    %cst_8 = arith.constant 0.000000e+00 : f32
    %18 = vector.broadcast %cst_7 : f32 to vector<8x64xf32>
    %19 = vector.broadcast %cst_8 : f32 to vector<8x64xf32>
    %20 = arith.select %17, %18, %19 : vector<8x64xi1>, vector<8x64xf32>
    %cst_9 = arith.constant dense<0.000000e+00> : vector<8x128xf32>
    %21 = tpu.matmul %20, %6, %cst_9 {dimension_numbers = #tpu.dot_dimension_numbers<[1], [0], [0], [1], [0, 0, 1, 1], [], []>} : vector<8x64xf32>, vector<64x128xf32>, vector<8x128xf32> -> vector<8x128xf32>
    %c0_10 = arith.constant 0 : index
    %c0_11 = arith.constant 0 : index
    %22 = vector.load %arg3[%c0_10, %c0_11] : memref<1x128xf32, #tpu.memory_space<vmem>>, vector<1x128xf32>
    %23 = vector.broadcast %22 : vector<1x128xf32> to vector<8x128xf32>
    %24 = arith.addf %21, %23 : vector<8x128xf32>
    %c0_12 = arith.constant 0 : index
    %c0_13 = arith.constant 0 : index
    %25 = vector.load %arg4[%c0_12, %c0_13] : memref<8x128xf32, #tpu.memory_space<vmem>>, vector<8x128xf32>
    tpu.vector_store %arg4[%c0_12, %c0_13], %24 {strides = array<i32>} : memref<8x128xf32, #tpu.memory_space<vmem>>, vector<8x128xf32>,
    return
  }
}

</mosaic_0001>

<llo_original>
// kernel: ft_net_swinv2_head.1
$region0: #{ft_net_swinv2_head.1}
  #allocation0 [shape = 'u32[]', space=smem, size = 0x4, offset = 0x4, fixed_abs, tag = 'smem constant byte address 0x4 - core index']
  #allocation1 [shape = 'u32[144,128]{1,0:T(1,128)}', space=vmem, size = 0x12000, scoped, tag = 'internal scratch']
  %s0 = inlined_call_operand.vmem [shape: f32[64,1024], index: 0, kind: input, shape index: {}]
  %s1 = inlined_call_operand.hbm [shape: bf16[1024,512], index: 1, kind: input, shape index: {}]
  %s2 = inlined_call_operand.vmem [shape: bf16[512,128], index: 2, kind: input, shape index: {}]
  %s3 = inlined_call_operand.vmem [shape: f32[1,128], index: 3, kind: input, shape index: {}]
  %s4 = inlined_call_operand.vmem [shape: f32[8,128], index: 4, kind: output, shape index: {}]
  %s5 = sld [smem:[#allocation0]]
  $region30: #{ft_net_swinv2_head.1} parent=0
    _
  %s7 = ssub.s32 1, %s5
  %s8 = scalar_select 0, %s7, %s5
  $region1: #{ft_net_swinv2_head.1} parent=0
    #allocation2 [shape = 'u8[1048576]{0}', space=vmem, size = 0x100000, scoped, tag = 'input window, operand 1, single buffered']
    #allocation3 [shape = 's32[1]{0}', space=sflag, size = 0x4, scoped, tag = 'scoped memory for ft_net_swinv2_head.1']
    %9 = vsyncpa [#allocation3], 0
    // Predicated region
    $region2: #{ft_net_swinv2_head.1} parent=1 // pred_check
      _
    $region3: #{ft_net_swinv2_head.1} parent=1 // pred_check_branch
      %11 = sbr.rel (0) target = $region5
    $region4: #{ft_net_swinv2_head.1} parent=1 // pred_region
      _
    $region5: #{ft_net_swinv2_head.1} parent=1 // pred_fallthru
      _
    // Predicated region
    $region6: #{ft_net_swinv2_head.1} parent=1 // pred_check
      _
    $region7: #{ft_net_swinv2_head.1} parent=1 // pred_check_branch
      %13 = sbr.rel (0) target = $region9
    $region8: #{ft_net_swinv2_head.1} parent=1 // pred_region
      %s15 = ssub.s32 32768, 32768
      %16 = vsyncadd [#allocation3], %s15
      %s17 = sshll.u32 [#allocation2], 4
      %s18 = int_to_ptr.vmem [resolvable:$true] %s17
      %23 = dma.hbm_to_vmem [thread:$0]  %s1, 32768, %s18, [#allocation3], 256, 256, 16
    $region9: #{ft_net_swinv2_head.1} parent=1 // pred_fallthru
      _
    // Predicated region
    $region10: #{ft_net_swinv2_head.1} parent=1 // pred_check
      _
    $region11: #{ft_net_swinv2_head.1} parent=1 // pred_check_branch
      %25 = sbr.rel (0) target = $region13
    $region12: #{ft_net_swinv2_head.1} parent=1 // pred_region
      _
    $region13: #{ft_net_swinv2_head.1} parent=1 // pred_fallthru
      _
    // Predicated region
    $region14: #{ft_net_swinv2_head.1} parent=1 // pred_check
      _
    $region15: #{ft_net_swinv2_head.1} parent=1 // pred_check_branch
      %27 = sbr.rel (0) target = $region17
    $region16: #{ft_net_swinv2_head.1} parent=1 // pred_region
      _
    $region17: #{ft_net_swinv2_head.1} parent=1 // pred_fallthru
      _
    // Predicated region
    $region18: #{ft_net_swinv2_head.1} parent=1 // pred_check
      _
    $region19: #{ft_net_swinv2_head.1} parent=1 // pred_check_branch
      %29 = sbr.rel (0) target = $region21
    $region20: #{ft_net_swinv2_head.1} parent=1 // pred_region
      %30 = dma.done [#allocation3], 32768
    $region21: #{ft_net_swinv2_head.1} parent=1 // pred_fallthru
      _
    %v32 = vld [vmem:[%s0] sm:$0xff]
    %v33 = vld [vmem:[%s0 + $0x8] sm:$0xff]
    %v34 = vld [vmem:[%s0 + $0x10] sm:$0xff]
    %v35 = vld [vmem:[%s0 + $0x18] sm:$0xff]
    %v36 = vld [vmem:[%s0 + $0x20] sm:$0xff]
    %v37 = vld [vmem:[%s0 + $0x28] sm:$0xff]
    %v38 = vld [vmem:[%s0 + $0x30] sm:$0xff]
    %v39 = vld [vmem:[%s0 + $0x38] sm:$0xff]
    %v40 = vld [vmem:[%s0 + $0x40] sm:$0xff]
    %v41 = vld [vmem:[%s0 + $0x48] sm:$0xff]
    %v42 = vld [vmem:[%s0 + $0x50] sm:$0xff]
    %v43 = vld [vmem:[%s0 + $0x58] sm:$0xff]
    %v44 = vld [vmem:[%s0 + $0x60] sm:$0xff]
    %v45 = vld [vmem:[%s0 + $0x68] sm:$0xff]
    %v46 = vld [vmem:[%s0 + $0x70] sm:$0xff]
    %v47 = vld [vmem:[%s0 + $0x78] sm:$0xff]
    %v48 = vld [vmem:[%s0 + $0x80] sm:$0xff]
    %v49 = vld [vmem:[%s0 + $0x88] sm:$0xff]
    %v50 = vld [vmem:[%s0 + $0x90] sm:$0xff]
    %v51 = vld [vmem:[%s0 + $0x98] sm:$0xff]
    %v52 = vld [vmem:[%s0 + $0xa0] sm:$0xff]
    %v53 = vld [vmem:[%s0 + $0xa8] sm:$0xff]
    %v54 = vld [vmem:[%s0 + $0xb0] sm:$0xff]
    %v55 = vld [vmem:[%s0 + $0xb8] sm:$0xff]
    %v56 = vld [vmem:[%s0 + $0xc0] sm:$0xff]
    %v57 = vld [vmem:[%s0 + $0xc8] sm:$0xff]
    %v58 = vld [vmem:[%s0 + $0xd0] sm:$0xff]
    %v59 = vld [vmem:[%s0 + $0xd8] sm:$0xff]
    %v60 = vld [vmem:[%s0 + $0xe0] sm:$0xff]
    %v61 = vld [vmem:[%s0 + $0xe8] sm:$0xff]
    %v62 = vld [vmem:[%s0 + $0xf0] sm:$0xff]
    %v63 = vld [vmem:[%s0 + $0xf8] sm:$0xff]
    %v64 = vld [vmem:[%s0 + $0x100] sm:$0xff]
    %v65 = vld [vmem:[%s0 + $0x108] sm:$0xff]
    %v66 = vld [vmem:[%s0 + $0x110] sm:$0xff]
    %v67 = vld [vmem:[%s0 + $0x118] sm:$0xff]
    %v68 = vld [vmem:[%s0 + $0x120] sm:$0xff]
    %v69 = vld [vmem:[%s0 + $0x128] sm:$0xff]
    %v70 = vld [vmem:[%s0 + $0x130] sm:$0xff]
    %v71 = vld [vmem:[%s0 + $0x138] sm:$0xff]
    %v72 = vld [vmem:[%s0 + $0x140] sm:$0xff]
    %v73 = vld [vmem:[%s0 + $0x148] sm:$0xff]
    %v74 = vld [vmem:[%s0 + $0x150] sm:$0xff]
    %v75 = vld [vmem:[%s0 + $0x158] sm:$0xff]
    %v76 = vld [vmem:[%s0 + $0x160] sm:$0xff]
    %v77 = vld [vmem:[%s0 + $0x168] sm:$0xff]
    %v78 = vld [vmem:[%s0 + $0x170] sm:$0xff]
    %v79 = vld [vmem:[%s0 + $0x178] sm:$0xff]
    %v80 = vld [vmem:[%s0 + $0x180] sm:$0xff]
    %v81 = vld [vmem:[%s0 + $0x188] sm:$0xff]
    %v82 = vld [vmem:[%s0 + $0x190] sm:$0xff]
    %v83 = vld [vmem:[%s0 + $0x198] sm:$0xff]
    %v84 = vld [vmem:[%s0 + $0x1a0] sm:$0xff]
    %v85 = vld [vmem:[%s0 + $0x1a8] sm:$0xff]
    %v86 = vld [vmem:[%s0 + $0x1b0] sm:$0xff]
    %v87 = vld [vmem:[%s0 + $0x1b8] sm:$0xff]
    %v88 = vld [vmem:[%s0 + $0x1c0] sm:$0xff]
    %v89 = vld [vmem:[%s0 + $0x1c8] sm:$0xff]
    %v90 = vld [vmem:[%s0 + $0x1d0] sm:$0xff]
    %v91 = vld [vmem:[%s0 + $0x1d8] sm:$0xff]
    %v92 = vld [vmem:[%s0 + $0x1e0] sm:$0xff]
    %v93 = vld [vmem:[%s0 + $0x1e8] sm:$0xff]
    %v94 = vld [vmem:[%s0 + $0x1f0] sm:$0xff]
    %v95 = vld [vmem:[%s0 + $0x1f8] sm:$0xff]
    %v96 = vpack.c.bf16 %v40, %v32
    %v97 = vpack.c.bf16 %v41, %v33
    %v98 = vpack.c.bf16 %v42, %v34
    %v99 = vpack.c.bf16 %v43, %v35
    %v100 = vpack.c.bf16 %v44, %v36
    %v101 = vpack.c.bf16 %v45, %v37
    %v102 = vpack.c.bf16 %v46, %v38
    %v103 = vpack.c.bf16 %v47, %v39
    %v104 = vpack.c.bf16 %v56, %v48
    %v105 = vpack.c.bf16 %v57, %v49
    %v106 = vpack.c.bf16 %v58, %v50
    %v107 = vpack.c.bf16 %v59, %v51
    %v108 = vpack.c.bf16 %v60, %v52
    %v109 = vpack.c.bf16 %v61, %v53
    %v110 = vpack.c.bf16 %v62, %v54
    %v111 = vpack.c.bf16 %v63, %v55
    %v112 = vpack.c.bf16 %v72, %v64
    %v113 = vpack.c.bf16 %v73, %v65
    %v114 = vpack.c.bf16 %v74, %v66
    %v115 = vpack.c.bf16 %v75, %v67
    %v116 = vpack.c.bf16 %v76, %v68
    %v117 = vpack.c.bf16 %v77, %v69
    %v118 = vpack.c.bf16 %v78, %v70
    %v119 = vpack.c.bf16 %v79, %v71
    %v120 = vpack.c.bf16 %v88, %v80
    %v121 = vpack.c.bf16 %v89, %v81
    %v122 = vpack.c.bf16 %v90, %v82
    %v123 = vpack.c.bf16 %v91, %v83
    %v124 = vpack.c.bf16 %v92, %v84
    %v125 = vpack.c.bf16 %v93, %v85
    %v126 = vpack.c.bf16 %v94, %v86
    %v127 = vpack.c.bf16 %v95, %v87
    %v128 = vld [vmem:[#allocation2] sm:$0xff]
    %v129 = vld [vmem:[#allocation2 + $0x8] sm:$0xff]
    %v130 = vld [vmem:[#allocation2 + $0x10] sm:$0xff]
    %v131 = vld [vmem:[#allocation2 + $0x18] sm:$0xff]
    %v132 = vld [vmem:[#allocation2 + $0x20] sm:$0xff]
    %v133 = vld [vmem:[#allocation2 + $0x28] sm:$0xff]
    %v134 = vld [vmem:[#allocation2 + $0x30] sm:$0xff]
    %v135 = vld [vmem:[#allocation2 + $0x38] sm:$0xff]
    %v136 = vld [vmem:[#allocation2 + $0x40] sm:$0xff]
    %v137 = vld [vmem:[#allocation2 + $0x48] sm:$0xff]
    %v138 = vld [vmem:[#allocation2 + $0x50] sm:$0xff]
    %v139 = vld [vmem:[#allocation2 + $0x58] sm:$0xff]
    %v140 = vld [vmem:[#allocation2 + $0x60] sm:$0xff]
    %v141 = vld [vmem:[#allocation2 + $0x68] sm:$0xff]
    %v142 = vld [vmem:[#allocation2 + $0x70] sm:$0xff]
    %v143 = vld [vmem:[#allocation2 + $0x78] sm:$0xff]
    %v144 = vld [vmem:[#allocation2 + $0x80] sm:$0xff]
    %v145 = vld [vmem:[#allocation2 + $0x88] sm:$0xff]
    %v146 = vld [vmem:[#allocation2 + $0x90] sm:$0xff]
    %v147 = vld [vmem:[#allocation2 + $0x98] sm:$0xff]
    %v148 = vld [vmem:[#allocation2 + $0xa0] sm:$0xff]
    %v149 = vld [vmem:[#allocation2 + $0xa8] sm:$0xff]
    %v150 = vld [vmem:[#allocation2 + $0xb0] sm:$0xff]
    %v151 = vld [vmem:[#allocation2 + $0xb8] sm:$0xff]
    %v152 = vld [vmem:[#allocation2 + $0xc0] sm:$0xff]
    %v153 = vld [vmem:[#allocation2 + $0xc8] sm:$0xff]
    %v154 = vld [vmem:[#allocation2 + $0xd0] sm:$0xff]
    %v155 = vld [vmem:[#allocation2 + $0xd8] sm:$0xff]
    %v156 = vld [vmem:[#allocation2 + $0xe0] sm:$0xff]
    %v157 = vld [vmem:[#allocation2 + $0xe8] sm:$0xff]
    %v158 = vld [vmem:[#allocation2 + $0xf0] sm:$0xff]
    %v159 = vld [vmem:[#allocation2 + $0xf8] sm:$0xff]
    %v160 = vld [vmem:[#allocation2 + $0x100] sm:$0xff]
    %v161 = vld [vmem:[#allocation2 + $0x108] sm:$0xff]
    %v162 = vld [vmem:[#allocation2 + $0x110] sm:$0xff]
    %v163 = vld [vmem:[#allocation2 + $0x118] sm:$0xff]
    %v164 = vld [vmem:[#allocation2 + $0x120] sm:$0xff]
    %v165 = vld [vmem:[#allocation2 + $0x128] sm:$0xff]
    %v166 = vld [vmem:[#allocation2 + $0x130] sm:$0xff]
    %v167 = vld [vmem:[#allocation2 + $0x138] sm:$0xff]
    %v168 = vld [vmem:[#allocation2 + $0x140] sm:$0xff]
    %v169 = vld [vmem:[#allocation2 + $0x148] sm:$0xff]
    %v170 = vld [vmem:[#allocation2 + $0x150] sm:$0xff]
    %v171 = vld [vmem:[#allocation2 + $0x158] sm:$0xff]
    %v172 = vld [vmem:[#allocation2 + $0x160] sm:$0xff]
    %v173 = vld [vmem:[#allocation2 + $0x168] sm:$0xff]
    %v174 = vld [vmem:[#allocation2 + $0x170] sm:$0xff]
    %v175 = vld [vmem:[#allocation2 + $0x178] sm:$0xff]
    %v176 = vld [vmem:[#allocation2 + $0x180] sm:$0xff]
    %v177 = vld [vmem:[#allocation2 + $0x188] sm:$0xff]
    %v178 = vld [vmem:[#allocation2 + $0x190] sm:$0xff]
    %v179 = vld [vmem:[#allocation2 + $0x198] sm:$0xff]
    %v180 = vld [vmem:[#allocation2 + $0x1a0] sm:$0xff]
    %v181 = vld [vmem:[#allocation2 + $0x1a8] sm:$0xff]
    %v182 = vld [vmem:[#allocation2 + $0x1b0] sm:$0xff]
    %v183 = vld [vmem:[#allocation2 + $0x1b8] sm:$0xff]
    %v184 = vld [vmem:[#allocation2 + $0x1c0] sm:$0xff]
    %v185 = vld [vmem:[#allocation2 + $0x1c8] sm:$0xff]
    %v186 = vld [vmem:[#allocation2 + $0x1d0] sm:$0xff]
    %v187 = vld [vmem:[#allocation2 + $0x1d8] sm:$0xff]
    %v188 = vld [vmem:[#allocation2 + $0x1e0] sm:$0xff]
    %v189 = vld [vmem:[#allocation2 + $0x1e8] sm:$0xff]
    %v190 = vld [vmem:[#allocation2 + $0x1f0] sm:$0xff]
    %v191 = vld [vmem:[#allocation2 + $0x1f8] sm:$0xff]
    %v192 = vld [vmem:[#allocation2 + $0x200] sm:$0xff]
    %v193 = vld [vmem:[#allocation2 + $0x208] sm:$0xff]
    %v194 = vld [vmem:[#allocation2 + $0x210] sm:$0xff]
    %v195 = vld [vmem:[#allocation2 + $0x218] sm:$0xff]
    %v196 = vld [vmem:[#allocation2 + $0x220] sm:$0xff]
    %v197 = vld [vmem:[#allocation2 + $0x228] sm:$0xff]
    %v198 = vld [vmem:[#allocation2 + $0x230] sm:$0xff]
    %v199 = vld [vmem:[#allocation2 + $0x238] sm:$0xff]
    %v200 = vld [vmem:[#allocation2 + $0x240] sm:$0xff]
    %v201 = vld [vmem:[#allocation2 + $0x248] sm:$0xff]
    %v202 = vld [vmem:[#allocation2 + $0x250] sm:$0xff]
    %v203 = vld [vmem:[#allocation2 + $0x258] sm:$0xff]
    %v204 = vld [vmem:[#allocation2 + $0x260] sm:$0xff]
    %v205 = vld [vmem:[#allocation2 + $0x268] sm:$0xff]
    %v206 = vld [vmem:[#allocation2 + $0x270] sm:$0xff]
    %v207 = vld [vmem:[#allocation2 + $0x278] sm:$0xff]
    %v208 = vld [vmem:[#allocation2 + $0x280] sm:$0xff]
    %v209 = vld [vmem:[#allocation2 + $0x288] sm:$0xff]
    %v210 = vld [vmem:[#allocation2 + $0x290] sm:$0xff]
    %v211 = vld [vmem:[#allocation2 + $0x298] sm:$0xff]
    %v212 = vld [vmem:[#allocation2 + $0x2a0] sm:$0xff]
    %v213 = vld [vmem:[#allocation2 + $0x2a8] sm:$0xff]
    %v214 = vld [vmem:[#allocation2 + $0x2b0] sm:$0xff]
    %v215 = vld [vmem:[#allocation2 + $0x2b8] sm:$0xff]
    %v216 = vld [vmem:[#allocation2 + $0x2c0] sm:$0xff]
    %v217 = vld [vmem:[#allocation2 + $0x2c8] sm:$0xff]
    %v218 = vld [vmem:[#allocation2 + $0x2d0] sm:$0xff]
    %v219 = vld [vmem:[#allocation2 + $0x2d8] sm:$0xff]
    %v220 = vld [vmem:[#allocation2 + $0x2e0] sm:$0xff]
    %v221 = vld [vmem:[#allocation2 + $0x2e8] sm:$0xff]
    %v222 = vld [vmem:[#allocation2 + $0x2f0] sm:$0xff]
    %v223 = vld [vmem:[#allocation2 + $0x2f8] sm:$0xff]
    %v224 = vld [vmem:[#allocation2 + $0x300] sm:$0xff]
    %v225 = vld [vmem:[#allocation2 + $0x308] sm:$0xff]
    %v226 = vld [vmem:[#allocation2 + $0x310] sm:$0xff]
    %v227 = vld [vmem:[#allocation2 + $0x318] sm:$0xff]
    %v228 = vld [vmem:[#allocation2 + $0x320] sm:$0xff]
    %v229 = vld [vmem:[#allocation2 + $0x328] sm:$0xff]
    %v230 = vld [vmem:[#allocation2 + $0x330] sm:$0xff]
    %v231 = vld [vmem:[#allocation2 + $0x338] sm:$0xff]
    %v232 = vld [vmem:[#allocation2 + $0x340] sm:$0xff]
    %v233 = vld [vmem:[#allocation2 + $0x348] sm:$0xff]
    %v234 = vld [vmem:[#allocation2 + $0x350] sm:$0xff]
    %v235 = vld [vmem:[#allocation2 + $0x358] sm:$0xff]
    %v236 = vld [vmem:[#allocation2 + $0x360] sm:$0xff]
    %v237 = vld [vmem:[#allocation2 + $0x368] sm:$0xff]
    %v238 = vld [vmem:[#allocation2 + $0x370] sm:$0xff]
    %v239 = vld [vmem:[#allocation2 + $0x378] sm:$0xff]
    %v240 = vld [vmem:[#allocation2 + $0x380] sm:$0xff]
    %v241 = vld [vmem:[#allocation2 + $0x388] sm:$0xff]
    %v242 = vld [vmem:[#allocation2 + $0x390] sm:$0xff]
    %v243 = vld [vmem:[#allocation2 + $0x398] sm:$0xff]
    %v244 = vld [vmem:[#allocation2 + $0x3a0] sm:$0xff]
    %v245 = vld [vmem:[#allocation2 + $0x3a8] sm:$0xff]
    %v246 = vld [vmem:[#allocation2 + $0x3b0] sm:$0xff]
    %v247 = vld [vmem:[#allocation2 + $0x3b8] sm:$0xff]
    %v248 = vld [vmem:[#allocation2 + $0x3c0] sm:$0xff]
    %v249 = vld [vmem:[#allocation2 + $0x3c8] sm:$0xff]
    %v250 = vld [vmem:[#allocation2 + $0x3d0] sm:$0xff]
    %v251 = vld [vmem:[#allocation2 + $0x3d8] sm:$0xff]
    %v252 = vld [vmem:[#allocation2 + $0x3e0] sm:$0xff]
    %v253 = vld [vmem:[#allocation2 + $0x3e8] sm:$0xff]
    %v254 = vld [vmem:[#allocation2 + $0x3f0] sm:$0xff]
    %v255 = vld [vmem:[#allocation2 + $0x3f8] sm:$0xff]
    %v256 = vld [vmem:[#allocation2 + $0x400] sm:$0xff]
    %v257 = vld [vmem:[#allocation2 + $0x408] sm:$0xff]
    %v258 = vld [vmem:[#allocation2 + $0x410] sm:$0xff]
    %v259 = vld [vmem:[#allocation2 + $0x418] sm:$0xff]
    %v260 = vld [vmem:[#allocation2 + $0x420] sm:$0xff]
    %v261 = vld [vmem:[#allocation2 + $0x428] sm:$0xff]
    %v262 = vld [vmem:[#allocation2 + $0x430] sm:$0xff]
    %v263 = vld [vmem:[#allocation2 + $0x438] sm:$0xff]
    %v264 = vld [vmem:[#allocation2 + $0x440] sm:$0xff]
    %v265 = vld [vmem:[#allocation2 + $0x448] sm:$0xff]
    %v266 = vld [vmem:[#allocation2 + $0x450] sm:$0xff]
    %v267 = vld [vmem:[#allocation2 + $0x458] sm:$0xff]
    %v268 = vld [vmem:[#allocation2 + $0x460] sm:$0xff]
    %v269 = vld [vmem:[#allocation2 + $0x468] sm:$0xff]
    %v270 = vld [vmem:[#allocation2 + $0x470] sm:$0xff]
    %v271 = vld [vmem:[#allocation2 + $0x478] sm:$0xff]
    %v272 = vld [vmem:[#allocation2 + $0x480] sm:$0xff]
    %v273 = vld [vmem:[#allocation2 + $0x488] sm:$0xff]
    %v274 = vld [vmem:[#allocation2 + $0x490] sm:$0xff]
    %v275 = vld [vmem:[#allocation2 + $0x498] sm:$0xff]
    %v276 = vld [vmem:[#allocation2 + $0x4a0] sm:$0xff]
    %v277 = vld [vmem:[#allocation2 + $0x4a8] sm:$0xff]
    %v278 = vld [vmem:[#allocation2 + $0x4b0] sm:$0xff]
    %v279 = vld [vmem:[#allocation2 + $0x4b8] sm:$0xff]
    %v280 = vld [vmem:[#allocation2 + $0x4c0] sm:$0xff]
    %v281 = vld [vmem:[#allocation2 + $0x4c8] sm:$0xff]
    %v282 = vld [vmem:[#allocation2 + $0x4d0] sm:$0xff]
    %v283 = vld [vmem:[#allocation2 + $0x4d8] sm:$0xff]
    %v284 = vld [vmem:[#allocation2 + $0x4e0] sm:$0xff]
    %v285 = vld [vmem:[#allocation2 + $0x4e8] sm:$0xff]
    %v286 = vld [vmem:[#allocation2 + $0x4f0] sm:$0xff]
    %v287 = vld [vmem:[#allocation2 + $0x4f8] sm:$0xff]
    %v288 = vld [vmem:[#allocation2 + $0x500] sm:$0xff]
    %v289 = vld [vmem:[#allocation2 + $0x508] sm:$0xff]
    %v290 = vld [vmem:[#allocation2 + $0x510] sm:$0xff]
    %v291 = vld [vmem:[#allocation2 + $0x518] sm:$0xff]
    %v292 = vld [vmem:[#allocation2 + $0x520] sm:$0xff]
    %v293 = vld [vmem:[#allocation2 + $0x528] sm:$0xff]
    %v294 = vld [vmem:[#allocation2 + $0x530] sm:$0xff]
    %v295 = vld [vmem:[#allocation2 + $0x538] sm:$0xff]
    %v296 = vld [vmem:[#allocation2 + $0x540] sm:$0xff]
    %v297 = vld [vmem:[#allocation2 + $0x548] sm:$0xff]
    %v298 = vld [vmem:[#allocation2 + $0x550] sm:$0xff]
    %v299 = vld [vmem:[#allocation2 + $0x558] sm:$0xff]
    %v300 = vld [vmem:[#allocation2 + $0x560] sm:$0xff]
    %v301 = vld [vmem:[#allocation2 + $0x568] sm:$0xff]
    %v302 = vld [vmem:[#allocation2 + $0x570] sm:$0xff]
    %v303 = vld [vmem:[#allocation2 + $0x578] sm:$0xff]
    %v304 = vld [vmem:[#allocation2 + $0x580] sm:$0xff]
    %v305 = vld [vmem:[#allocation2 + $0x588] sm:$0xff]
    %v306 = vld [vmem:[#allocation2 + $0x590] sm:$0xff]
    %v307 = vld [vmem:[#allocation2 + $0x598] sm:$0xff]
    %v308 = vld [vmem:[#allocation2 + $0x5a0] sm:$0xff]
    %v309 = vld [vmem:[#allocation2 + $0x5a8] sm:$0xff]
    %v310 = vld [vmem:[#allocation2 + $0x5b0] sm:$0xff]
    %v311 = vld [vmem:[#allocation2 + $0x5b8] sm:$0xff]
    %v312 = vld [vmem:[#allocation2 + $0x5c0] sm:$0xff]
    %v313 = vld [vmem:[#allocation2 + $0x5c8] sm:$0xff]
    %v314 = vld [vmem:[#allocation2 + $0x5d0] sm:$0xff]
    %v315 = vld [vmem:[#allocation2 + $0x5d8] sm:$0xff]
    %v316 = vld [vmem:[#allocation2 + $0x5e0] sm:$0xff]
    %v317 = vld [vmem:[#allocation2 + $0x5e8] sm:$0xff]
    %v318 = vld [vmem:[#allocation2 + $0x5f0] sm:$0xff]
    %v319 = vld [vmem:[#allocation2 + $0x5f8] sm:$0xff]
    %v320 = vld [vmem:[#allocation2 + $0x600] sm:$0xff]
    %v321 = vld [vmem:[#allocation2 + $0x608] sm:$0xff]
    %v322 = vld [vmem:[#allocation2 + $0x610] sm:$0xff]
    %v323 = vld [vmem:[#allocation2 + $0x618] sm:$0xff]
    %v324 = vld [vmem:[#allocation2 + $0x620] sm:$0xff]
    %v325 = vld [vmem:[#allocation2 + $0x628] sm:$0xff]
    %v326 = vld [vmem:[#allocation2 + $0x630] sm:$0xff]
    %v327 = vld [vmem:[#allocation2 + $0x638] sm:$0xff]
    %v328 = vld [vmem:[#allocation2 + $0x640] sm:$0xff]
    %v329 = vld [vmem:[#allocation2 + $0x648] sm:$0xff]
    %v330 = vld [vmem:[#allocation2 + $0x650] sm:$0xff]
    %v331 = vld [vmem:[#allocation2 + $0x658] sm:$0xff]
    %v332 = vld [vmem:[#allocation2 + $0x660] sm:$0xff]
    %v333 = vld [vmem:[#allocation2 + $0x668] sm:$0xff]
    %v334 = vld [vmem:[#allocation2 + $0x670] sm:$0xff]
    %v335 = vld [vmem:[#allocation2 + $0x678] sm:$0xff]
    %v336 = vld [vmem:[#allocation2 + $0x680] sm:$0xff]
    %v337 = vld [vmem:[#allocation2 + $0x688] sm:$0xff]
    %v338 = vld [vmem:[#allocation2 + $0x690] sm:$0xff]
    %v339 = vld [vmem:[#allocation2 + $0x698] sm:$0xff]
    %v340 = vld [vmem:[#allocation2 + $0x6a0] sm:$0xff]
    %v341 = vld [vmem:[#allocation2 + $0x6a8] sm:$0xff]
    %v342 = vld [vmem:[#allocation2 + $0x6b0] sm:$0xff]
    %v343 = vld [vmem:[#allocation2 + $0x6b8] sm:$0xff]
    %v344 = vld [vmem:[#allocation2 + $0x6c0] sm:$0xff]
    %v345 = vld [vmem:[#allocation2 + $0x6c8] sm:$0xff]
    %v346 = vld [vmem:[#allocation2 + $0x6d0] sm:$0xff]
    %v347 = vld [vmem:[#allocation2 + $0x6d8] sm:$0xff]
    %v348 = vld [vmem:[#allocation2 + $0x6e0] sm:$0xff]
    %v349 = vld [vmem:[#allocation2 + $0x6e8] sm:$0xff]
    %v350 = vld [vmem:[#allocation2 + $0x6f0] sm:$0xff]
    %v351 = vld [vmem:[#allocation2 + $0x6f8] sm:$0xff]
    %v352 = vld [vmem:[#allocation2 + $0x700] sm:$0xff]
    %v353 = vld [vmem:[#allocation2 + $0x708] sm:$0xff]
    %v354 = vld [vmem:[#allocation2 + $0x710] sm:$0xff]
    %v355 = vld [vmem:[#allocation2 + $0x718] sm:$0xff]
    %v356 = vld [vmem:[#allocation2 + $0x720] sm:$0xff]
    %v357 = vld [vmem:[#allocation2 + $0x728] sm:$0xff]
    %v358 = vld [vmem:[#allocation2 + $0x730] sm:$0xff]
    %v359 = vld [vmem:[#allocation2 + $0x738] sm:$0xff]
    %v360 = vld [vmem:[#allocation2 + $0x740] sm:$0xff]
    %v361 = vld [vmem:[#allocation2 + $0x748] sm:$0xff]
    %v362 = vld [vmem:[#allocation2 + $0x750] sm:$0xff]
    %v363 = vld [vmem:[#allocation2 + $0x758] sm:$0xff]
    %v364 = vld [vmem:[#allocation2 + $0x760] sm:$0xff]
    %v365 = vld [vmem:[#allocation2 + $0x768] sm:$0xff]
    %v366 = vld [vmem:[#allocation2 + $0x770] sm:$0xff]
    %v367 = vld [vmem:[#allocation2 + $0x778] sm:$0xff]
    %v368 = vld [vmem:[#allocation2 + $0x780] sm:$0xff]
    %v369 = vld [vmem:[#allocation2 + $0x788] sm:$0xff]
    %v370 = vld [vmem:[#allocation2 + $0x790] sm:$0xff]
    %v371 = vld [vmem:[#allocation2 + $0x798] sm:$0xff]
    %v372 = vld [vmem:[#allocation2 + $0x7a0] sm:$0xff]
    %v373 = vld [vmem:[#allocation2 + $0x7a8] sm:$0xff]
    %v374 = vld [vmem:[#allocation2 + $0x7b0] sm:$0xff]
    %v375 = vld [vmem:[#allocation2 + $0x7b8] sm:$0xff]
    %v376 = vld [vmem:[#allocation2 + $0x7c0] sm:$0xff]
    %v377 = vld [vmem:[#allocation2 + $0x7c8] sm:$0xff]
    %v378 = vld [vmem:[#allocation2 + $0x7d0] sm:$0xff]
    %v379 = vld [vmem:[#allocation2 + $0x7d8] sm:$0xff]
    %v380 = vld [vmem:[#allocation2 + $0x7e0] sm:$0xff]
    %v381 = vld [vmem:[#allocation2 + $0x7e8] sm:$0xff]
    %v382 = vld [vmem:[#allocation2 + $0x7f0] sm:$0xff]
    %v383 = vld [vmem:[#allocation2 + $0x7f8] sm:$0xff]
    %v640 = vunpack.c.l.b16 %v128
    %v641 = vunpack.c.h.b16 %v128
    %v642 = vunpack.c.l.b16 %v129
    %v643 = vunpack.c.h.b16 %v129
    %v644 = vunpack.c.l.b16 %v130
    %v645 = vunpack.c.h.b16 %v130
    %v646 = vunpack.c.l.b16 %v131
    %v647 = vunpack.c.h.b16 %v131
    %v648 = vunpack.c.l.b16 %v132
    %v649 = vunpack.c.h.b16 %v132
    %v650 = vunpack.c.l.b16 %v133
    %v651 = vunpack.c.h.b16 %v133
    %v652 = vunpack.c.l.b16 %v134
    %v653 = vunpack.c.h.b16 %v134
    %v654 = vunpack.c.l.b16 %v135
    %v655 = vunpack.c.h.b16 %v135
    %v656 = vunpack.c.l.b16 %v136
    %v657 = vunpack.c.h.b16 %v136
    %v658 = vunpack.c.l.b16 %v137
    %v659 = vunpack.c.h.b16 %v137
    %v660 = vunpack.c.l.b16 %v138
    %v661 = vunpack.c.h.b16 %v138
    %v662 = vunpack.c.l.b16 %v139
    %v663 = vunpack.c.h.b16 %v139
    %v664 = vunpack.c.l.b16 %v140
    %v665 = vunpack.c.h.b16 %v140
    %v666 = vunpack.c.l.b16 %v141
    %v667 = vunpack.c.h.b16 %v141
    %v668 = vunpack.c.l.b16 %v142
    %v669 = vunpack.c.h.b16 %v142
    %v670 = vunpack.c.l.b16 %v143
    %v671 = vunpack.c.h.b16 %v143
    %v672 = vunpack.c.l.b16 %v144
    %v673 = vunpack.c.h.b16 %v144
    %v674 = vunpack.c.l.b16 %v145
    %v675 = vunpack.c.h.b16 %v145
    %v676 = vunpack.c.l.b16 %v146
    %v677 = vunpack.c.h.b16 %v146
    %v678 = vunpack.c.l.b16 %v147
    %v679 = vunpack.c.h.b16 %v147
    %v680 = vunpack.c.l.b16 %v148
    %v681 = vunpack.c.h.b16 %v148
    %v682 = vunpack.c.l.b16 %v149
    %v683 = vunpack.c.h.b16 %v149
    %v684 = vunpack.c.l.b16 %v150
    %v685 = vunpack.c.h.b16 %v150
    %v686 = vunpack.c.l.b16 %v151
    %v687 = vunpack.c.h.b16 %v151
    %v688 = vunpack.c.l.b16 %v152
    %v689 = vunpack.c.h.b16 %v152
    %v690 = vunpack.c.l.b16 %v153
    %v691 = vunpack.c.h.b16 %v153
    %v692 = vunpack.c.l.b16 %v154
    %v693 = vunpack.c.h.b16 %v154
    %v694 = vunpack.c.l.b16 %v155
    %v695 = vunpack.c.h.b16 %v155
    %v696 = vunpack.c.l.b16 %v156
    %v697 = vunpack.c.h.b16 %v156
    %v698 = vunpack.c.l.b16 %v157
    %v699 = vunpack.c.h.b16 %v157
    %v700 = vunpack.c.l.b16 %v158
    %v701 = vunpack.c.h.b16 %v158
    %v702 = vunpack.c.l.b16 %v159
    %v703 = vunpack.c.h.b16 %v159
    %v704 = vunpack.c.l.b16 %v160
    %v705 = vunpack.c.h.b16 %v160
    %v706 = vunpack.c.l.b16 %v161
    %v707 = vunpack.c.h.b16 %v161
    %v708 = vunpack.c.l.b16 %v162
    %v709 = vunpack.c.h.b16 %v162
    %v710 = vunpack.c.l.b16 %v163
    %v711 = vunpack.c.h.b16 %v163
    %v712 = vunpack.c.l.b16 %v164
    %v713 = vunpack.c.h.b16 %v164
    %v714 = vunpack.c.l.b16 %v165
    %v715 = vunpack.c.h.b16 %v165
    %v716 = vunpack.c.l.b16 %v166
    %v717 = vunpack.c.h.b16 %v166
    %v718 = vunpack.c.l.b16 %v167
    %v719 = vunpack.c.h.b16 %v167
    %v720 = vunpack.c.l.b16 %v168
    %v721 = vunpack.c.h.b16 %v168
    %v722 = vunpack.c.l.b16 %v169
    %v723 = vunpack.c.h.b16 %v169
    %v724 = vunpack.c.l.b16 %v170
    %v725 = vunpack.c.h.b16 %v170
    %v726 = vunpack.c.l.b16 %v171
    %v727 = vunpack.c.h.b16 %v171
    %v728 = vunpack.c.l.b16 %v172
    %v729 = vunpack.c.h.b16 %v172
    %v730 = vunpack.c.l.b16 %v173
    %v731 = vunpack.c.h.b16 %v173
    %v732 = vunpack.c.l.b16 %v174
    %v733 = vunpack.c.h.b16 %v174
    %v734 = vunpack.c.l.b16 %v175
    %v735 = vunpack.c.h.b16 %v175
    %v736 = vunpack.c.l.b16 %v176
    %v737 = vunpack.c.h.b16 %v176
    %v738 = vunpack.c.l.b16 %v177
    %v739 = vunpack.c.h.b16 %v177
    %v740 = vunpack.c.l.b16 %v178
    %v741 = vunpack.c.h.b16 %v178
    %v742 = vunpack.c.l.b16 %v179
    %v743 = vunpack.c.h.b16 %v179
    %v744 = vunpack.c.l.b16 %v180
    %v745 = vunpack.c.h.b16 %v180
    %v746 = vunpack.c.l.b16 %v181
    %v747 = vunpack.c.h.b16 %v181
    %v748 = vunpack.c.l.b16 %v182
    %v749 = vunpack.c.h.b16 %v182
    %v750 = vunpack.c.l.b16 %v183
    %v751 = vunpack.c.h.b16 %v183
    %v752 = vunpack.c.l.b16 %v184
    %v753 = vunpack.c.h.b16 %v184
    %v754 = vunpack.c.l.b16 %v185
    %v755 = vunpack.c.h.b16 %v185
    %v756 = vunpack.c.l.b16 %v186
    %v757 = vunpack.c.h.b16 %v186
    %v758 = vunpack.c.l.b16 %v187
    %v759 = vunpack.c.h.b16 %v187
    %v760 = vunpack.c.l.b16 %v188
    %v761 = vunpack.c.h.b16 %v188
    %v762 = vunpack.c.l.b16 %v189
    %v763 = vunpack.c.h.b16 %v189
    %v764 = vunpack.c.l.b16 %v190
    %v765 = vunpack.c.h.b16 %v190
    %v766 = vunpack.c.l.b16 %v191
    %v767 = vunpack.c.h.b16 %v191
    %v768 = vunpack.c.l.b16 %v192
    %v769 = vunpack.c.h.b16 %v192
    %v770 = vunpack.c.l.b16 %v193
    %v771 = vunpack.c.h.b16 %v193
    %v772 = vunpack.c.l.b16 %v194
    %v773 = vunpack.c.h.b16 %v194
    %v774 = vunpack.c.l.b16 %v195
    %v775 = vunpack.c.h.b16 %v195
    %v776 = vunpack.c.l.b16 %v196
    %v777 = vunpack.c.h.b16 %v196
    %v778 = vunpack.c.l.b16 %v197
    %v779 = vunpack.c.h.b16 %v197
    %v780 = vunpack.c.l.b16 %v198
    %v781 = vunpack.c.h.b16 %v198
    %v782 = vunpack.c.l.b16 %v199
    %v783 = vunpack.c.h.b16 %v199
    %v784 = vunpack.c.l.b16 %v200
    %v785 = vunpack.c.h.b16 %v200
    %v786 = vunpack.c.l.b16 %v201
    %v787 = vunpack.c.h.b16 %v201
    %v788 = vunpack.c.l.b16 %v202
    %v789 = vunpack.c.h.b16 %v202
    %v790 = vunpack.c.l.b16 %v203
    %v791 = vunpack.c.h.b16 %v203
    %v792 = vunpack.c.l.b16 %v204
    %v793 = vunpack.c.h.b16 %v204
    %v794 = vunpack.c.l.b16 %v205
    %v795 = vunpack.c.h.b16 %v205
    %v796 = vunpack.c.l.b16 %v206
    %v797 = vunpack.c.h.b16 %v206
    %v798 = vunpack.c.l.b16 %v207
    %v799 = vunpack.c.h.b16 %v207
    %v800 = vunpack.c.l.b16 %v208
    %v801 = vunpack.c.h.b16 %v208
    %v802 = vunpack.c.l.b16 %v209
    %v803 = vunpack.c.h.b16 %v209
    %v804 = vunpack.c.l.b16 %v210
    %v805 = vunpack.c.h.b16 %v210
    %v806 = vunpack.c.l.b16 %v211
    %v807 = vunpack.c.h.b16 %v211
    %v808 = vunpack.c.l.b16 %v212
    %v809 = vunpack.c.h.b16 %v212
    %v810 = vunpack.c.l.b16 %v213
    %v811 = vunpack.c.h.b16 %v213
    %v812 = vunpack.c.l.b16 %v214
    %v813 = vunpack.c.h.b16 %v214
    %v814 = vunpack.c.l.b16 %v215
    %v815 = vunpack.c.h.b16 %v215
    %v816 = vunpack.c.l.b16 %v216
    %v817 = vunpack.c.h.b16 %v216
    %v818 = vunpack.c.l.b16 %v217
    %v819 = vunpack.c.h.b16 %v217
    %v820 = vunpack.c.l.b16 %v218
    %v821 = vunpack.c.h.b16 %v218
    %v822 = vunpack.c.l.b16 %v219
    %v823 = vunpack.c.h.b16 %v219
    %v824 = vunpack.c.l.b16 %v220
    %v825 = vunpack.c.h.b16 %v220
    %v826 = vunpack.c.l.b16 %v221
    %v827 = vunpack.c.h.b16 %v221
    %v828 = vunpack.c.l.b16 %v222
    %v829 = vunpack.c.h.b16 %v222
    %v830 = vunpack.c.l.b16 %v223
    %v831 = vunpack.c.h.b16 %v223
    %v832 = vunpack.c.l.b16 %v224
    %v833 = vunpack.c.h.b16 %v224
    %v834 = vunpack.c.l.b16 %v225
    %v835 = vunpack.c.h.b16 %v225
    %v836 = vunpack.c.l.b16 %v226
    %v837 = vunpack.c.h.b16 %v226
    %v838 = vunpack.c.l.b16 %v227
    %v839 = vunpack.c.h.b16 %v227
    %v840 = vunpack.c.l.b16 %v228
    %v841 = vunpack.c.h.b16 %v228
    %v842 = vunpack.c.l.b16 %v229
    %v843 = vunpack.c.h.b16 %v229
    %v844 = vunpack.c.l.b16 %v230
    %v845 = vunpack.c.h.b16 %v230
    %v846 = vunpack.c.l.b16 %v231
    %v847 = vunpack.c.h.b16 %v231
    %v848 = vunpack.c.l.b16 %v232
    %v849 = vunpack.c.h.b16 %v232
    %v850 = vunpack.c.l.b16 %v233
    %v851 = vunpack.c.h.b16 %v233
    %v852 = vunpack.c.l.b16 %v234
    %v853 = vunpack.c.h.b16 %v234
    %v854 = vunpack.c.l.b16 %v235
    %v855 = vunpack.c.h.b16 %v235
    %v856 = vunpack.c.l.b16 %v236
    %v857 = vunpack.c.h.b16 %v236
    %v858 = vunpack.c.l.b16 %v237
    %v859 = vunpack.c.h.b16 %v237
    %v860 = vunpack.c.l.b16 %v238
    %v861 = vunpack.c.h.b16 %v238
    %v862 = vunpack.c.l.b16 %v239
    %v863 = vunpack.c.h.b16 %v239
    %v864 = vunpack.c.l.b16 %v240
    %v865 = vunpack.c.h.b16 %v240
    %v866 = vunpack.c.l.b16 %v241
    %v867 = vunpack.c.h.b16 %v241
    %v868 = vunpack.c.l.b16 %v242
    %v869 = vunpack.c.h.b16 %v242
    %v870 = vunpack.c.l.b16 %v243
    %v871 = vunpack.c.h.b16 %v243
    %v872 = vunpack.c.l.b16 %v244
    %v873 = vunpack.c.h.b16 %v244
    %v874 = vunpack.c.l.b16 %v245
    %v875 = vunpack.c.h.b16 %v245
    %v876 = vunpack.c.l.b16 %v246
    %v877 = vunpack.c.h.b16 %v246
    %v878 = vunpack.c.l.b16 %v247
    %v879 = vunpack.c.h.b16 %v247
    %v880 = vunpack.c.l.b16 %v248
    %v881 = vunpack.c.h.b16 %v248
    %v882 = vunpack.c.l.b16 %v249
    %v883 = vunpack.c.h.b16 %v249
    %v884 = vunpack.c.l.b16 %v250
    %v885 = vunpack.c.h.b16 %v250
    %v886 = vunpack.c.l.b16 %v251
    %v887 = vunpack.c.h.b16 %v251
    %v888 = vunpack.c.l.b16 %v252
    %v889 = vunpack.c.h.b16 %v252
    %v890 = vunpack.c.l.b16 %v253
    %v891 = vunpack.c.h.b16 %v253
    %v892 = vunpack.c.l.b16 %v254
    %v893 = vunpack.c.h.b16 %v254
    %v894 = vunpack.c.l.b16 %v255
    %v895 = vunpack.c.h.b16 %v255
    %v896 = vunpack.c.l.b16 %v256
    %v897 = vunpack.c.h.b16 %v256
    %v898 = vunpack.c.l.b16 %v257
    %v899 = vunpack.c.h.b16 %v257
    %v900 = vunpack.c.l.b16 %v258
    %v901 = vunpack.c.h.b16 %v258
    %v902 = vunpack.c.l.b16 %v259
    %v903 = vunpack.c.h.b16 %v259
    %v904 = vunpack.c.l.b16 %v260
    %v905 = vunpack.c.h.b16 %v260
    %v906 = vunpack.c.l.b16 %v261
    %v907 = vunpack.c.h.b16 %v261
    %v908 = vunpack.c.l.b16 %v262
    %v909 = vunpack.c.h.b16 %v262
    %v910 = vunpack.c.l.b16 %v263
    %v911 = vunpack.c.h.b16 %v263
    %v912 = vunpack.c.l.b16 %v264
    %v913 = vunpack.c.h.b16 %v264
    %v914 = vunpack.c.l.b16 %v265
    %v915 = vunpack.c.h.b16 %v265
    %v916 = vunpack.c.l.b16 %v266
    %v917 = vunpack.c.h.b16 %v266
    %v918 = vunpack.c.l.b16 %v267
    %v919 = vunpack.c.h.b16 %v267
    %v920 = vunpack.c.l.b16 %v268
    %v921 = vunpack.c.h.b16 %v268
    %v922 = vunpack.c.l.b16 %v269
    %v923 = vunpack.c.h.b16 %v269
    %v924 = vunpack.c.l.b16 %v270
    %v925 = vunpack.c.h.b16 %v270
    %v926 = vunpack.c.l.b16 %v271
    %v927 = vunpack.c.h.b16 %v271
    %v928 = vunpack.c.l.b16 %v272
    %v929 = vunpack.c.h.b16 %v272
    %v930 = vunpack.c.l.b16 %v273
    %v931 = vunpack.c.h.b16 %v273
    %v932 = vunpack.c.l.b16 %v274
    %v933 = vunpack.c.h.b16 %v274
    %v934 = vunpack.c.l.b16 %v275
    %v935 = vunpack.c.h.b16 %v275
    %v936 = vunpack.c.l.b16 %v276
    %v937 = vunpack.c.h.b16 %v276
    %v938 = vunpack.c.l.b16 %v277
    %v939 = vunpack.c.h.b16 %v277
    %v940 = vunpack.c.l.b16 %v278
    %v941 = vunpack.c.h.b16 %v278
    %v942 = vunpack.c.l.b16 %v279
    %v943 = vunpack.c.h.b16 %v279
    %v944 = vunpack.c.l.b16 %v280
    %v945 = vunpack.c.h.b16 %v280
    %v946 = vunpack.c.l.b16 %v281
    %v947 = vunpack.c.h.b16 %v281
    %v948 = vunpack.c.l.b16 %v282
    %v949 = vunpack.c.h.b16 %v282
    %v950 = vunpack.c.l.b16 %v283
    %v951 = vunpack.c.h.b16 %v283
    %v952 = vunpack.c.l.b16 %v284
    %v953 = vunpack.c.h.b16 %v284
    %v954 = vunpack.c.l.b16 %v285
    %v955 = vunpack.c.h.b16 %v285
    %v956 = vunpack.c.l.b16 %v286
    %v957 = vunpack.c.h.b16 %v286
    %v958 = vunpack.c.l.b16 %v287
    %v959 = vunpack.c.h.b16 %v287
    %v960 = vunpack.c.l.b16 %v288
    %v961 = vunpack.c.h.b16 %v288
    %v962 = vunpack.c.l.b16 %v289
    %v963 = vunpack.c.h.b16 %v289
    %v964 = vunpack.c.l.b16 %v290
    %v965 = vunpack.c.h.b16 %v290
    %v966 = vunpack.c.l.b16 %v291
    %v967 = vunpack.c.h.b16 %v291
    %v968 = vunpack.c.l.b16 %v292
    %v969 = vunpack.c.h.b16 %v292
    %v970 = vunpack.c.l.b16 %v293
    %v971 = vunpack.c.h.b16 %v293
    %v972 = vunpack.c.l.b16 %v294
    %v973 = vunpack.c.h.b16 %v294
    %v974 = vunpack.c.l.b16 %v295
    %v975 = vunpack.c.h.b16 %v295
    %v976 = vunpack.c.l.b16 %v296
    %v977 = vunpack.c.h.b16 %v296
    %v978 = vunpack.c.l.b16 %v297
    %v979 = vunpack.c.h.b16 %v297
    %v980 = vunpack.c.l.b16 %v298
    %v981 = vunpack.c.h.b16 %v298
    %v982 = vunpack.c.l.b16 %v299
    %v983 = vunpack.c.h.b16 %v299
    %v984 = vunpack.c.l.b16 %v300
    %v985 = vunpack.c.h.b16 %v300
    %v986 = vunpack.c.l.b16 %v301
    %v987 = vunpack.c.h.b16 %v301
    %v988 = vunpack.c.l.b16 %v302
    %v989 = vunpack.c.h.b16 %v302
    %v990 = vunpack.c.l.b16 %v303
    %v991 = vunpack.c.h.b16 %v303
    %v992 = vunpack.c.l.b16 %v304
    %v993 = vunpack.c.h.b16 %v304
    %v994 = vunpack.c.l.b16 %v305
    %v995 = vunpack.c.h.b16 %v305
    %v996 = vunpack.c.l.b16 %v306
    %v997 = vunpack.c.h.b16 %v306
    %v998 = vunpack.c.l.b16 %v307
    %v999 = vunpack.c.h.b16 %v307
    %v1000 = vunpack.c.l.b16 %v308
    %v1001 = vunpack.c.h.b16 %v308
    %v1002 = vunpack.c.l.b16 %v309
    %v1003 = vunpack.c.h.b16 %v309
    %v1004 = vunpack.c.l.b16 %v310
    %v1005 = vunpack.c.h.b16 %v310
    %v1006 = vunpack.c.l.b16 %v311
    %v1007 = vunpack.c.h.b16 %v311
    %v1008 = vunpack.c.l.b16 %v312
    %v1009 = vunpack.c.h.b16 %v312
    %v1010 = vunpack.c.l.b16 %v313
    %v1011 = vunpack.c.h.b16 %v313
    %v1012 = vunpack.c.l.b16 %v314
    %v1013 = vunpack.c.h.b16 %v314
    %v1014 = vunpack.c.l.b16 %v315
    %v1015 = vunpack.c.h.b16 %v315
    %v1016 = vunpack.c.l.b16 %v316
    %v1017 = vunpack.c.h.b16 %v316
    %v1018 = vunpack.c.l.b16 %v317
    %v1019 = vunpack.c.h.b16 %v317
    %v1020 = vunpack.c.l.b16 %v318
    %v1021 = vunpack.c.h.b16 %v318
    %v1022 = vunpack.c.l.b16 %v319
    %v1023 = vunpack.c.h.b16 %v319
    %v1024 = vunpack.c.l.b16 %v320
    %v1025 = vunpack.c.h.b16 %v320
    %v1026 = vunpack.c.l.b16 %v321
    %v1027 = vunpack.c.h.b16 %v321
    %v1028 = vunpack.c.l.b16 %v322
    %v1029 = vunpack.c.h.b16 %v322
    %v1030 = vunpack.c.l.b16 %v323
    %v1031 = vunpack.c.h.b16 %v323
    %v1032 = vunpack.c.l.b16 %v324
    %v1033 = vunpack.c.h.b16 %v324
    %v1034 = vunpack.c.l.b16 %v325
    %v1035 = vunpack.c.h.b16 %v325
    %v1036 = vunpack.c.l.b16 %v326
    %v1037 = vunpack.c.h.b16 %v326
    %v1038 = vunpack.c.l.b16 %v327
    %v1039 = vunpack.c.h.b16 %v327
    %v1040 = vunpack.c.l.b16 %v328
    %v1041 = vunpack.c.h.b16 %v328
    %v1042 = vunpack.c.l.b16 %v329
    %v1043 = vunpack.c.h.b16 %v329
    %v1044 = vunpack.c.l.b16 %v330
    %v1045 = vunpack.c.h.b16 %v330
    %v1046 = vunpack.c.l.b16 %v331
    %v1047 = vunpack.c.h.b16 %v331
    %v1048 = vunpack.c.l.b16 %v332
    %v1049 = vunpack.c.h.b16 %v332
    %v1050 = vunpack.c.l.b16 %v333
    %v1051 = vunpack.c.h.b16 %v333
    %v1052 = vunpack.c.l.b16 %v334
    %v1053 = vunpack.c.h.b16 %v334
    %v1054 = vunpack.c.l.b16 %v335
    %v1055 = vunpack.c.h.b16 %v335
    %v1056 = vunpack.c.l.b16 %v336
    %v1057 = vunpack.c.h.b16 %v336
    %v1058 = vunpack.c.l.b16 %v337
    %v1059 = vunpack.c.h.b16 %v337
    %v1060 = vunpack.c.l.b16 %v338
    %v1061 = vunpack.c.h.b16 %v338
    %v1062 = vunpack.c.l.b16 %v339
    %v1063 = vunpack.c.h.b16 %v339
    %v1064 = vunpack.c.l.b16 %v340
    %v1065 = vunpack.c.h.b16 %v340
    %v1066 = vunpack.c.l.b16 %v341
    %v1067 = vunpack.c.h.b16 %v341
    %v1068 = vunpack.c.l.b16 %v342
    %v1069 = vunpack.c.h.b16 %v342
    %v1070 = vunpack.c.l.b16 %v343
    %v1071 = vunpack.c.h.b16 %v343
    %v1072 = vunpack.c.l.b16 %v344
    %v1073 = vunpack.c.h.b16 %v344
    %v1074 = vunpack.c.l.b16 %v345
    %v1075 = vunpack.c.h.b16 %v345
    %v1076 = vunpack.c.l.b16 %v346
    %v1077 = vunpack.c.h.b16 %v346
    %v1078 = vunpack.c.l.b16 %v347
    %v1079 = vunpack.c.h.b16 %v347
    %v1080 = vunpack.c.l.b16 %v348
    %v1081 = vunpack.c.h.b16 %v348
    %v1082 = vunpack.c.l.b16 %v349
    %v1083 = vunpack.c.h.b16 %v349
    %v1084 = vunpack.c.l.b16 %v350
    %v1085 = vunpack.c.h.b16 %v350
    %v1086 = vunpack.c.l.b16 %v351
    %v1087 = vunpack.c.h.b16 %v351
    %v1088 = vunpack.c.l.b16 %v352
    %v1089 = vunpack.c.h.b16 %v352
    %v1090 = vunpack.c.l.b16 %v353
    %v1091 = vunpack.c.h.b16 %v353
    %v1092 = vunpack.c.l.b16 %v354
    %v1093 = vunpack.c.h.b16 %v354
    %v1094 = vunpack.c.l.b16 %v355
    %v1095 = vunpack.c.h.b16 %v355
    %v1096 = vunpack.c.l.b16 %v356
    %v1097 = vunpack.c.h.b16 %v356
    %v1098 = vunpack.c.l.b16 %v357
    %v1099 = vunpack.c.h.b16 %v357
    %v1100 = vunpack.c.l.b16 %v358
    %v1101 = vunpack.c.h.b16 %v358
    %v1102 = vunpack.c.l.b16 %v359
    %v1103 = vunpack.c.h.b16 %v359
    %v1104 = vunpack.c.l.b16 %v360
    %v1105 = vunpack.c.h.b16 %v360
    %v1106 = vunpack.c.l.b16 %v361
    %v1107 = vunpack.c.h.b16 %v361
    %v1108 = vunpack.c.l.b16 %v362
    %v1109 = vunpack.c.h.b16 %v362
    %v1110 = vunpack.c.l.b16 %v363
    %v1111 = vunpack.c.h.b16 %v363
    %v1112 = vunpack.c.l.b16 %v364
    %v1113 = vunpack.c.h.b16 %v364
    %v1114 = vunpack.c.l.b16 %v365
    %v1115 = vunpack.c.h.b16 %v365
    %v1116 = vunpack.c.l.b16 %v366
    %v1117 = vunpack.c.h.b16 %v366
    %v1118 = vunpack.c.l.b16 %v367
    %v1119 = vunpack.c.h.b16 %v367
    %v1120 = vunpack.c.l.b16 %v368
    %v1121 = vunpack.c.h.b16 %v368
    %v1122 = vunpack.c.l.b16 %v369
    %v1123 = vunpack.c.h.b16 %v369
    %v1124 = vunpack.c.l.b16 %v370
    %v1125 = vunpack.c.h.b16 %v370
    %v1126 = vunpack.c.l.b16 %v371
    %v1127 = vunpack.c.h.b16 %v371
    %v1128 = vunpack.c.l.b16 %v372
    %v1129 = vunpack.c.h.b16 %v372
    %v1130 = vunpack.c.l.b16 %v373
    %v1131 = vunpack.c.h.b16 %v373
    %v1132 = vunpack.c.l.b16 %v374
    %v1133 = vunpack.c.h.b16 %v374
    %v1134 = vunpack.c.l.b16 %v375
    %v1135 = vunpack.c.h.b16 %v375
    %v1136 = vunpack.c.l.b16 %v376
    %v1137 = vunpack.c.h.b16 %v376
    %v1138 = vunpack.c.l.b16 %v377
    %v1139 = vunpack.c.h.b16 %v377
    %v1140 = vunpack.c.l.b16 %v378
    %v1141 = vunpack.c.h.b16 %v378
    %v1142 = vunpack.c.l.b16 %v379
    %v1143 = vunpack.c.h.b16 %v379
    %v1144 = vunpack.c.l.b16 %v380
    %v1145 = vunpack.c.h.b16 %v380
    %v1146 = vunpack.c.l.b16 %v381
    %v1147 = vunpack.c.h.b16 %v381
    %v1148 = vunpack.c.l.b16 %v382
    %v1149 = vunpack.c.h.b16 %v382
    %v1150 = vunpack.c.l.b16 %v383
    %v1151 = vunpack.c.h.b16 %v383
    %v1152 = vpack.c.b16 %v644, %v640
    %v1153 = vpack.c.b16 %v645, %v641
    %v1154 = vpack.c.b16 %v646, %v642
    %v1155 = vpack.c.b16 %v647, %v643
    %v1156 = vpack.c.b16 %v652, %v648
    %v1157 = vpack.c.b16 %v653, %v649
    %v1158 = vpack.c.b16 %v654, %v650
    %v1159 = vpack.c.b16 %v655, %v651
    %v1160 = vpack.c.b16 %v660, %v656
    %v1161 = vpack.c.b16 %v661, %v657
    %v1162 = vpack.c.b16 %v662, %v658
    %v1163 = vpack.c.b16 %v663, %v659
    %v1164 = vpack.c.b16 %v668, %v664
    %v1165 = vpack.c.b16 %v669, %v665
    %v1166 = vpack.c.b16 %v670, %v666
    %v1167 = vpack.c.b16 %v671, %v667
    %v1168 = vpack.c.b16 %v676, %v672
    %v1169 = vpack.c.b16 %v677, %v673
    %v1170 = vpack.c.b16 %v678, %v674
    %v1171 = vpack.c.b16 %v679, %v675
    %v1172 = vpack.c.b16 %v684, %v680
    %v1173 = vpack.c.b16 %v685, %v681
    %v1174 = vpack.c.b16 %v686, %v682
    %v1175 = vpack.c.b16 %v687, %v683
    %v1176 = vpack.c.b16 %v692, %v688
    %v1177 = vpack.c.b16 %v693, %v689
    %v1178 = vpack.c.b16 %v694, %v690
    %v1179 = vpack.c.b16 %v695, %v691
    %v1180 = vpack.c.b16 %v700, %v696
    %v1181 = vpack.c.b16 %v701, %v697
    %v1182 = vpack.c.b16 %v702, %v698
    %v1183 = vpack.c.b16 %v703, %v699
    %v1184 = vpack.c.b16 %v708, %v704
    %v1185 = vpack.c.b16 %v709, %v705
    %v1186 = vpack.c.b16 %v710, %v706
    %v1187 = vpack.c.b16 %v711, %v707
    %v1188 = vpack.c.b16 %v716, %v712
    %v1189 = vpack.c.b16 %v717, %v713
    %v1190 = vpack.c.b16 %v718, %v714
    %v1191 = vpack.c.b16 %v719, %v715
    %v1192 = vpack.c.b16 %v724, %v720
    %v1193 = vpack.c.b16 %v725, %v721
    %v1194 = vpack.c.b16 %v726, %v722
    %v1195 = vpack.c.b16 %v727, %v723
    %v1196 = vpack.c.b16 %v732, %v728
    %v1197 = vpack.c.b16 %v733, %v729
    %v1198 = vpack.c.b16 %v734, %v730
    %v1199 = vpack.c.b16 %v735, %v731
    %v1200 = vpack.c.b16 %v740, %v736
    %v1201 = vpack.c.b16 %v741, %v737
    %v1202 = vpack.c.b16 %v742, %v738
    %v1203 = vpack.c.b16 %v743, %v739
    %v1204 = vpack.c.b16 %v748, %v744
    %v1205 = vpack.c.b16 %v749, %v745
    %v1206 = vpack.c.b16 %v750, %v746
    %v1207 = vpack.c.b16 %v751, %v747
    %v1208 = vpack.c.b16 %v756, %v752
    %v1209 = vpack.c.b16 %v757, %v753
    %v1210 = vpack.c.b16 %v758, %v754
    %v1211 = vpack.c.b16 %v759, %v755
    %v1212 = vpack.c.b16 %v764, %v760
    %v1213 = vpack.c.b16 %v765, %v761
    %v1214 = vpack.c.b16 %v766, %v762
    %v1215 = vpack.c.b16 %v767, %v763
    %v1216 = vpack.c.b16 %v772, %v768
    %v1217 = vpack.c.b16 %v773, %v769
    %v1218 = vpack.c.b16 %v774, %v770
    %v1219 = vpack.c.b16 %v775, %v771
    %v1220 = vpack.c.b16 %v780, %v776
    %v1221 = vpack.c.b16 %v781, %v777
    %v1222 = vpack.c.b16 %v782, %v778
    %v1223 = vpack.c.b16 %v783, %v779
    %v1224 = vpack.c.b16 %v788, %v784
    %v1225 = vpack.c.b16 %v789, %v785
    %v1226 = vpack.c.b16 %v790, %v786
    %v1227 = vpack.c.b16 %v791, %v787
    %v1228 = vpack.c.b16 %v796, %v792
    %v1229 = vpack.c.b16 %v797, %v793
    %v1230 = vpack.c.b16 %v798, %v794
    %v1231 = vpack.c.b16 %v799, %v795
    %v1232 = vpack.c.b16 %v804, %v800
    %v1233 = vpack.c.b16 %v805, %v801
    %v1234 = vpack.c.b16 %v806, %v802
    %v1235 = vpack.c.b16 %v807, %v803
    %v1236 = vpack.c.b16 %v812, %v808
    %v1237 = vpack.c.b16 %v813, %v809
    %v1238 = vpack.c.b16 %v814, %v810
    %v1239 = vpack.c.b16 %v815, %v811
    %v1240 = vpack.c.b16 %v820, %v816
    %v1241 = vpack.c.b16 %v821, %v817
    %v1242 = vpack.c.b16 %v822, %v818
    %v1243 = vpack.c.b16 %v823, %v819
    %v1244 = vpack.c.b16 %v828, %v824
    %v1245 = vpack.c.b16 %v829, %v825
    %v1246 = vpack.c.b16 %v830, %v826
    %v1247 = vpack.c.b16 %v831, %v827
    %v1248 = vpack.c.b16 %v836, %v832
    %v1249 = vpack.c.b16 %v837, %v833
    %v1250 = vpack.c.b16 %v838, %v834
    %v1251 = vpack.c.b16 %v839, %v835
    %v1252 = vpack.c.b16 %v844, %v840
    %v1253 = vpack.c.b16 %v845, %v841
    %v1254 = vpack.c.b16 %v846, %v842
    %v1255 = vpack.c.b16 %v847, %v843
    %v1256 = vpack.c.b16 %v852, %v848
    %v1257 = vpack.c.b16 %v853, %v849
    %v1258 = vpack.c.b16 %v854, %v850
    %v1259 = vpack.c.b16 %v855, %v851
    %v1260 = vpack.c.b16 %v860, %v856
    %v1261 = vpack.c.b16 %v861, %v857
    %v1262 = vpack.c.b16 %v862, %v858
    %v1263 = vpack.c.b16 %v863, %v859
    %v1264 = vpack.c.b16 %v868, %v864
    %v1265 = vpack.c.b16 %v869, %v865
    %v1266 = vpack.c.b16 %v870, %v866
    %v1267 = vpack.c.b16 %v871, %v867
    %v1268 = vpack.c.b16 %v876, %v872
    %v1269 = vpack.c.b16 %v877, %v873
    %v1270 = vpack.c.b16 %v878, %v874
    %v1271 = vpack.c.b16 %v879, %v875
    %v1272 = vpack.c.b16 %v884, %v880
    %v1273 = vpack.c.b16 %v885, %v881
    %v1274 = vpack.c.b16 %v886, %v882
    %v1275 = vpack.c.b16 %v887, %v883
    %v1276 = vpack.c.b16 %v892, %v888
    %v1277 = vpack.c.b16 %v893, %v889
    %v1278 = vpack.c.b16 %v894, %v890
    %v1279 = vpack.c.b16 %v895, %v891
    %v1280 = vpack.c.b16 %v900, %v896
    %v1281 = vpack.c.b16 %v901, %v897
    %v1282 = vpack.c.b16 %v902, %v898
    %v1283 = vpack.c.b16 %v903, %v899
    %v1284 = vpack.c.b16 %v908, %v904
    %v1285 = vpack.c.b16 %v909, %v905
    %v1286 = vpack.c.b16 %v910, %v906
    %v1287 = vpack.c.b16 %v911, %v907
    %v1288 = vpack.c.b16 %v916, %v912
    %v1289 = vpack.c.b16 %v917, %v913
    %v1290 = vpack.c.b16 %v918, %v914
    %v1291 = vpack.c.b16 %v919, %v915
    %v1292 = vpack.c.b16 %v924, %v920
    %v1293 = vpack.c.b16 %v925, %v921
    %v1294 = vpack.c.b16 %v926, %v922
    %v1295 = vpack.c.b16 %v927, %v923
    %v1296 = vpack.c.b16 %v932, %v928
    %v1297 = vpack.c.b16 %v933, %v929
    %v1298 = vpack.c.b16 %v934, %v930
    %v1299 = vpack.c.b16 %v935, %v931
    %v1300 = vpack.c.b16 %v940, %v936
    %v1301 = vpack.c.b16 %v941, %v937
    %v1302 = vpack.c.b16 %v942, %v938
    %v1303 = vpack.c.b16 %v943, %v939
    %v1304 = vpack.c.b16 %v948, %v944
    %v1305 = vpack.c.b16 %v949, %v945
    %v1306 = vpack.c.b16 %v950, %v946
    %v1307 = vpack.c.b16 %v951, %v947
    %v1308 = vpack.c.b16 %v956, %v952
    %v1309 = vpack.c.b16 %v957, %v953
    %v1310 = vpack.c.b16 %v958, %v954
    %v1311 = vpack.c.b16 %v959, %v955
    %v1312 = vpack.c.b16 %v964, %v960
    %v1313 = vpack.c.b16 %v965, %v961
    %v1314 = vpack.c.b16 %v966, %v962
    %v1315 = vpack.c.b16 %v967, %v963
    %v1316 = vpack.c.b16 %v972, %v968
    %v1317 = vpack.c.b16 %v973, %v969
    %v1318 = vpack.c.b16 %v974, %v970
    %v1319 = vpack.c.b16 %v975, %v971
    %v1320 = vpack.c.b16 %v980, %v976
    %v1321 = vpack.c.b16 %v981, %v977
    %v1322 = vpack.c.b16 %v982, %v978
    %v1323 = vpack.c.b16 %v983, %v979
    %v1324 = vpack.c.b16 %v988, %v984
    %v1325 = vpack.c.b16 %v989, %v985
    %v1326 = vpack.c.b16 %v990, %v986
    %v1327 = vpack.c.b16 %v991, %v987
    %v1328 = vpack.c.b16 %v996, %v992
    %v1329 = vpack.c.b16 %v997, %v993
    %v1330 = vpack.c.b16 %v998, %v994
    %v1331 = vpack.c.b16 %v999, %v995
    %v1332 = vpack.c.b16 %v1004, %v1000
    %v1333 = vpack.c.b16 %v1005, %v1001
    %v1334 = vpack.c.b16 %v1006, %v1002
    %v1335 = vpack.c.b16 %v1007, %v1003
    %v1336 = vpack.c.b16 %v1012, %v1008
    %v1337 = vpack.c.b16 %v1013, %v1009
    %v1338 = vpack.c.b16 %v1014, %v1010
    %v1339 = vpack.c.b16 %v1015, %v1011
    %v1340 = vpack.c.b16 %v1020, %v1016
    %v1341 = vpack.c.b16 %v1021, %v1017
    %v1342 = vpack.c.b16 %v1022, %v1018
    %v1343 = vpack.c.b16 %v1023, %v1019
    %v1344 = vpack.c.b16 %v1028, %v1024
    %v1345 = vpack.c.b16 %v1029, %v1025
    %v1346 = vpack.c.b16 %v1030, %v1026
    %v1347 = vpack.c.b16 %v1031, %v1027
    %v1348 = vpack.c.b16 %v1036, %v1032
    %v1349 = vpack.c.b16 %v1037, %v1033
    %v1350 = vpack.c.b16 %v1038, %v1034
    %v1351 = vpack.c.b16 %v1039, %v1035
    %v1352 = vpack.c.b16 %v1044, %v1040
    %v1353 = vpack.c.b16 %v1045, %v1041
    %v1354 = vpack.c.b16 %v1046, %v1042
    %v1355 = vpack.c.b16 %v1047, %v1043
    %v1356 = vpack.c.b16 %v1052, %v1048
    %v1357 = vpack.c.b16 %v1053, %v1049
    %v1358 = vpack.c.b16 %v1054, %v1050
    %v1359 = vpack.c.b16 %v1055, %v1051
    %v1360 = vpack.c.b16 %v1060, %v1056
    %v1361 = vpack.c.b16 %v1061, %v1057
    %v1362 = vpack.c.b16 %v1062, %v1058
    %v1363 = vpack.c.b16 %v1063, %v1059
    %v1364 = vpack.c.b16 %v1068, %v1064
    %v1365 = vpack.c.b16 %v1069, %v1065
    %v1366 = vpack.c.b16 %v1070, %v1066
    %v1367 = vpack.c.b16 %v1071, %v1067
    %v1368 = vpack.c.b16 %v1076, %v1072
    %v1369 = vpack.c.b16 %v1077, %v1073
    %v1370 = vpack.c.b16 %v1078, %v1074
    %v1371 = vpack.c.b16 %v1079, %v1075
    %v1372 = vpack.c.b16 %v1084, %v1080
    %v1373 = vpack.c.b16 %v1085, %v1081
    %v1374 = vpack.c.b16 %v1086, %v1082
    %v1375 = vpack.c.b16 %v1087, %v1083
    %v1376 = vpack.c.b16 %v1092, %v1088
    %v1377 = vpack.c.b16 %v1093, %v1089
    %v1378 = vpack.c.b16 %v1094, %v1090
    %v1379 = vpack.c.b16 %v1095, %v1091
    %v1380 = vpack.c.b16 %v1100, %v1096
    %v1381 = vpack.c.b16 %v1101, %v1097
    %v1382 = vpack.c.b16 %v1102, %v1098
    %v1383 = vpack.c.b16 %v1103, %v1099
    %v1384 = vpack.c.b16 %v1108, %v1104
    %v1385 = vpack.c.b16 %v1109, %v1105
    %v1386 = vpack.c.b16 %v1110, %v1106
    %v1387 = vpack.c.b16 %v1111, %v1107
    %v1388 = vpack.c.b16 %v1116, %v1112
    %v1389 = vpack.c.b16 %v1117, %v1113
    %v1390 = vpack.c.b16 %v1118, %v1114
    %v1391 = vpack.c.b16 %v1119, %v1115
    %v1392 = vpack.c.b16 %v1124, %v1120
    %v1393 = vpack.c.b16 %v1125, %v1121
    %v1394 = vpack.c.b16 %v1126, %v1122
    %v1395 = vpack.c.b16 %v1127, %v1123
    %v1396 = vpack.c.b16 %v1132, %v1128
    %v1397 = vpack.c.b16 %v1133, %v1129
    %v1398 = vpack.c.b16 %v1134, %v1130
    %v1399 = vpack.c.b16 %v1135, %v1131
    %v1400 = vpack.c.b16 %v1140, %v1136
    %v1401 = vpack.c.b16 %v1141, %v1137
    %v1402 = vpack.c.b16 %v1142, %v1138
    %v1403 = vpack.c.b16 %v1143, %v1139
    %v1404 = vpack.c.b16 %v1148, %v1144
    %v1405 = vpack.c.b16 %v1149, %v1145
    %v1406 = vpack.c.b16 %v1150, %v1146
    %v1407 = vpack.c.b16 %v1151, %v1147
    %1664 = vmatprep.subr.bf16.mxu0 %v1153
    %1665 = vmatpush1.bf16.msra.mxu0 %v1152
    %1666 = vmatprep.subr.bf16.mxu0 %v1157
    %1667 = vmatpush1.bf16.msra.mxu0 %v1156
    %1668 = vmatprep.subr.bf16.mxu0 %v1161
    %1669 = vmatpush1.bf16.msra.mxu0 %v1160
    %1670 = vmatprep.subr.bf16.mxu0 %v1165
    %1671 = vmatpush1.bf16.msra.mxu0 %v1164
    %1672 = vmatprep.subr.bf16.mxu0 %v1169
    %1673 = vmatpush1.bf16.msra.mxu0 %v1168
    %1674 = vmatprep.subr.bf16.mxu0 %v1173
    %1675 = vmatpush1.bf16.msra.mxu0 %v1172
    %1676 = vmatprep.subr.bf16.mxu0 %v1177
    %1677 = vmatpush1.bf16.msra.mxu0 %v1176
    %1678 = vmatprep.subr.bf16.mxu0 %v1181
    %1679 = vmatpush1.bf16.msra.mxu0 %v1180
    %1680 = vmatprep.subr.bf16.mxu0 %v1185
    %1681 = vmatpush1.bf16.msra.mxu0 %v1184
    %1682 = vmatprep.subr.bf16.mxu0 %v1189
    %1683 = vmatpush1.bf16.msra.mxu0 %v1188
    %1684 = vmatprep.subr.bf16.mxu0 %v1193
    %1685 = vmatpush1.bf16.msra.mxu0 %v1192
    %1686 = vmatprep.subr.bf16.mxu0 %v1197
    %1687 = vmatpush1.bf16.msra.mxu0 %v1196
    %1688 = vmatprep.subr.bf16.mxu0 %v1201
    %1689 = vmatpush1.bf16.msra.mxu0 %v1200
    %1690 = vmatprep.subr.bf16.mxu0 %v1205
    %1691 = vmatpush1.bf16.msra.mxu0 %v1204
    %1692 = vmatprep.subr.bf16.mxu0 %v1209
    %1693 = vmatpush1.bf16.msra.mxu0 %v1208
    %1694 = vmatprep.subr.bf16.mxu0 %v1213
    %1695 = vmatpush1.bf16.msra.mxu0 %v1212
    %1696 = vmatprep.mubr.bf16.mxu0 %v97
    %1697 = vmatmul.mubr.bf16.gmra.mrb[0].mxu0 %v96
    %v1698 = vpop.f32.mrb[0].mxu0
    %v1699 = vadd.f32 0.0, %v1698
    %v1700 = vpop.f32.mrb[0].mxu0
    %v1701 = vadd.f32 0.0, %v1700
    %v1702 = vpop.f32.mrb[0].mxu0
    %v1703 = vadd.f32 0.0, %v1702
    %v1704 = vpop.f32.mrb[0].mxu0
    %v1705 = vadd.f32 0.0, %v1704
    %1706 = vmatprep.mubr.bf16.mxu0 %v105
    %1707 = vmatmul.mubr.bf16.gmra.mrb[0].mxu0 %v104
    %v1708 = vpop.f32.mrb[0].mxu0
    %v1709 = vadd.f32 0.0, %v1708
    %v1710 = vpop.f32.mrb[0].mxu0
    %v1711 = vadd.f32 0.0, %v1710
    %v1712 = vpop.f32.mrb[0].mxu0
    %v1713 = vadd.f32 0.0, %v1712
    %v1714 = vpop.f32.mrb[0].mxu0
    %v1715 = vadd.f32 0.0, %v1714
    %1716 = vmatprep.mubr.bf16.mxu0 %v113
    %1717 = vmatmul.mubr.bf16.gmra.mrb[0].mxu0 %v112
    %v1718 = vpop.f32.mrb[0].mxu0
    %v1719 = vadd.f32 0.0, %v1718
    %v1720 = vpop.f32.mrb[0].mxu0
    %v1721 = vadd.f32 0.0, %v1720
    %v1722 = vpop.f32.mrb[0].mxu0
    %v1723 = vadd.f32 0.0, %v1722
    %v1724 = vpop.f32.mrb[0].mxu0
    %v1725 = vadd.f32 0.0, %v1724
    %1726 = vmatprep.mubr.bf16.mxu0 %v121
    %1727 = vmatmul.mubr.bf16.gmra.mrb[0].mxu0 %v120
    %v1728 = vpop.f32.mrb[0].mxu0
    %v1729 = vadd.f32 0.0, %v1728
    %v1730 = vpop.f32.mrb[0].mxu0
    %v1731 = vadd.f32 0.0, %v1730
    %v1732 = vpop.f32.mrb[0].mxu0
    %v1733 = vadd.f32 0.0, %v1732
    %v1734 = vpop.f32.mrb[0].mxu0
    %v1735 = vadd.f32 0.0, %v1734
    %1736 = vdwg.mxu0
    %1737 = vmatprep.subr.bf16.mxu0 %v1217
    %1738 = vmatpush1.bf16.msra.mxu0 %v1216
    %1739 = vmatprep.subr.bf16.mxu0 %v1221
    %1740 = vmatpush1.bf16.msra.mxu0 %v1220
    %1741 = vmatprep.subr.bf16.mxu0 %v1225
    %1742 = vmatpush1.bf16.msra.mxu0 %v1224
    %1743 = vmatprep.subr.bf16.mxu0 %v1229
    %1744 = vmatpush1.bf16.msra.mxu0 %v1228
    %1745 = vmatprep.subr.bf16.mxu0 %v1233
    %1746 = vmatpush1.bf16.msra.mxu0 %v1232
    %1747 = vmatprep.subr.bf16.mxu0 %v1237
    %1748 = vmatpush1.bf16.msra.mxu0 %v1236
    %1749 = vmatprep.subr.bf16.mxu0 %v1241
    %1750 = vmatpush1.bf16.msra.mxu0 %v1240
    %1751 = vmatprep.subr.bf16.mxu0 %v1245
    %1752 = vmatpush1.bf16.msra.mxu0 %v1244
    %1753 = vmatprep.subr.bf16.mxu0 %v1249
    %1754 = vmatpush1.bf16.msra.mxu0 %v1248
    %1755 = vmatprep.subr.bf16.mxu0 %v1253
    %1756 = vmatpush1.bf16.msra.mxu0 %v1252
    %1757 = vmatprep.subr.bf16.mxu0 %v1257
    %1758 = vmatpush1.bf16.msra.mxu0 %v1256
    %1759 = vmatprep.subr.bf16.mxu0 %v1261
    %1760 = vmatpush1.bf16.msra.mxu0 %v1260
    %1761 = vmatprep.subr.bf16.mxu0 %v1265
    %1762 = vmatpush1.bf16.msra.mxu0 %v1264
    %1763 = vmatprep.subr.bf16.mxu0 %v1269
    %1764 = vmatpush1.bf16.msra.mxu0 %v1268
    %1765 = vmatprep.subr.bf16.mxu0 %v1273
    %1766 = vmatpush1.bf16.msra.mxu0 %v1272
    %1767 = vmatprep.subr.bf16.mxu0 %v1277
    %1768 = vmatpush1.bf16.msra.mxu0 %v1276
    %1769 = vmatprep.mubr.bf16.mxu0 %v99
    %1770 = vmatmul.mubr.bf16.gmra.mrb[0].mxu0 %v98
    %v1771 = vpop.f32.mrb[0].mxu0
    %v1772 = vadd.f32 %v1699, %v1771
    %v1773 = vpop.f32.mrb[0].mxu0
    %v1774 = vadd.f32 %v1701, %v1773
    %v1775 = vpop.f32.mrb[0].mxu0
    %v1776 = vadd.f32 %v1703, %v1775
    %v1777 = vpop.f32.mrb[0].mxu0
    %v1778 = vadd.f32 %v1705, %v1777
    %1779 = vmatprep.mubr.bf16.mxu0 %v107
    %1780 = vmatmul.mubr.bf16.gmra.mrb[0].mxu0 %v106
    %v1781 = vpop.f32.mrb[0].mxu0
    %v1782 = vadd.f32 %v1709, %v1781
    %v1783 = vpop.f32.mrb[0].mxu0
    %v1784 = vadd.f32 %v1711, %v1783
    %v1785 = vpop.f32.mrb[0].mxu0
    %v1786 = vadd.f32 %v1713, %v1785
    %v1787 = vpop.f32.mrb[0].mxu0
    %v1788 = vadd.f32 %v1715, %v1787
    %1789 = vmatprep.mubr.bf16.mxu0 %v115
    %1790 = vmatmul.mubr.bf16.gmra.mrb[0].mxu0 %v114
    %v1791 = vpop.f32.mrb[0].mxu0
    %v1792 = vadd.f32 %v1719, %v1791
    %v1793 = vpop.f32.mrb[0].mxu0
    %v1794 = vadd.f32 %v1721, %v1793
    %v1795 = vpop.f32.mrb[0].mxu0
    %v1796 = vadd.f32 %v1723, %v1795
    %v1797 = vpop.f32.mrb[0].mxu0
    %v1798 = vadd.f32 %v1725, %v1797
    %1799 = vmatprep.mubr.bf16.mxu0 %v123
    %1800 = vmatmul.mubr.bf16.gmra.mrb[0].mxu0 %v122
    %v1801 = vpop.f32.mrb[0].mxu0
    %v1802 = vadd.f32 %v1729, %v1801
    %v1803 = vpop.f32.mrb[0].mxu0
    %v1804 = vadd.f32 %v1731, %v1803
    %v1805 = vpop.f32.mrb[0].mxu0
    %v1806 = vadd.f32 %v1733, %v1805
    %v1807 = vpop.f32.mrb[0].mxu0
    %v1808 = vadd.f32 %v1735, %v1807
    %1809 = vdwg.mxu0
    %1810 = vmatprep.subr.bf16.mxu0 %v1281
    %1811 = vmatpush1.bf16.msra.mxu0 %v1280
    %1812 = vmatprep.subr.bf16.mxu0 %v1285
    %1813 = vmatpush1.bf16.msra.mxu0 %v1284
    %1814 = vmatprep.subr.bf16.mxu0 %v1289
    %1815 = vmatpush1.bf16.msra.mxu0 %v1288
    %1816 = vmatprep.subr.bf16.mxu0 %v1293
    %1817 = vmatpush1.bf16.msra.mxu0 %v1292
    %1818 = vmatprep.subr.bf16.mxu0 %v1297
    %1819 = vmatpush1.bf16.msra.mxu0 %v1296
    %1820 = vmatprep.subr.bf16.mxu0 %v1301
    %1821 = vmatpush1.bf16.msra.mxu0 %v1300
    %1822 = vmatprep.subr.bf16.mxu0 %v1305
    %1823 = vmatpush1.bf16.msra.mxu0 %v1304
    %1824 = vmatprep.subr.bf16.mxu0 %v1309
    %1825 = vmatpush1.bf16.msra.mxu0 %v1308
    %1826 = vmatprep.subr.bf16.mxu0 %v1313
    %1827 = vmatpush1.bf16.msra.mxu0 %v1312
    %1828 = vmatprep.subr.bf16.mxu0 %v1317
    %1829 = vmatpush1.bf16.msra.mxu0 %v1316
    %1830 = vmatprep.subr.bf16.mxu0 %v1321
    %1831 = vmatpush1.bf16.msra.mxu0 %v1320
    %1832 = vmatprep.subr.bf16.mxu0 %v1325
    %1833 = vmatpush1.bf16.msra.mxu0 %v1324
    %1834 = vmatprep.subr.bf16.mxu0 %v1329
    %1835 = vmatpush1.bf16.msra.mxu0 %v1328
    %1836 = vmatprep.subr.bf16.mxu0 %v1333
    %1837 = vmatpush1.bf16.msra.mxu0 %v1332
    %1838 = vmatprep.subr.bf16.mxu0 %v1337
    %1839 = vmatpush1.bf16.msra.mxu0 %v1336
    %1840 = vmatprep.subr.bf16.mxu0 %v1341
    %1841 = vmatpush1.bf16.msra.mxu0 %v1340
    %1842 = vmatprep.mubr.bf16.mxu0 %v101
    %1843 = vmatmul.mubr.bf16.gmra.mrb[0].mxu0 %v100
    %v1844 = vpop.f32.mrb[0].mxu0
    %v1845 = vadd.f32 %v1772, %v1844
    %v1846 = vpop.f32.mrb[0].mxu0
    %v1847 = vadd.f32 %v1774, %v1846
    %v1848 = vpop.f32.mrb[0].mxu0
    %v1849 = vadd.f32 %v1776, %v1848
    %v1850 = vpop.f32.mrb[0].mxu0
    %v1851 = vadd.f32 %v1778, %v1850
    %1852 = vmatprep.mubr.bf16.mxu0 %v109
    %1853 = vmatmul.mubr.bf16.gmra.mrb[0].mxu0 %v108
    %v1854 = vpop.f32.mrb[0].mxu0
    %v1855 = vadd.f32 %v1782, %v1854
    %v1856 = vpop.f32.mrb[0].mxu0
    %v1857 = vadd.f32 %v1784, %v1856
    %v1858 = vpop.f32.mrb[0].mxu0
    %v1859 = vadd.f32 %v1786, %v1858
    %v1860 = vpop.f32.mrb[0].mxu0
    %v1861 = vadd.f32 %v1788, %v1860
    %1862 = vmatprep.mubr.bf16.mxu0 %v117
    %1863 = vmatmul.mubr.bf16.gmra.mrb[0].mxu0 %v116
    %v1864 = vpop.f32.mrb[0].mxu0
    %v1865 = vadd.f32 %v1792, %v1864
    %v1866 = vpop.f32.mrb[0].mxu0
    %v1867 = vadd.f32 %v1794, %v1866
    %v1868 = vpop.f32.mrb[0].mxu0
    %v1869 = vadd.f32 %v1796, %v1868
    %v1870 = vpop.f32.mrb[0].mxu0
    %v1871 = vadd.f32 %v1798, %v1870
    %1872 = vmatprep.mubr.bf16.mxu0 %v125
    %1873 = vmatmul.mubr.bf16.gmra.mrb[0].mxu0 %v124
    %v1874 = vpop.f32.mrb[0].mxu0
    %v1875 = vadd.f32 %v1802, %v1874
    %v1876 = vpop.f32.mrb[0].mxu0
    %v1877 = vadd.f32 %v1804, %v1876
    %v1878 = vpop.f32.mrb[0].mxu0
    %v1879 = vadd.f32 %v1806, %v1878
    %v1880 = vpop.f32.mrb[0].mxu0
    %v1881 = vadd.f32 %v1808, %v1880
    %1882 = vdwg.mxu0
    %1883 = vmatprep.subr.bf16.mxu0 %v1345
    %1884 = vmatpush1.bf16.msra.mxu0 %v1344
    %1885 = vmatprep.subr.bf16.mxu0 %v1349
    %1886 = vmatpush1.bf16.msra.mxu0 %v1348
    %1887 = vmatprep.subr.bf16.mxu0 %v1353
    %1888 = vmatpush1.bf16.msra.mxu0 %v1352
    %1889 = vmatprep.subr.bf16.mxu0 %v1357
    %1890 = vmatpush1.bf16.msra.mxu0 %v1356
    %1891 = vmatprep.subr.bf16.mxu0 %v1361
    %1892 = vmatpush1.bf16.msra.mxu0 %v1360
    %1893 = vmatprep.subr.bf16.mxu0 %v1365
    %1894 = vmatpush1.bf16.msra.mxu0 %v1364
    %1895 = vmatprep.subr.bf16.mxu0 %v1369
    %1896 = vmatpush1.bf16.msra.mxu0 %v1368
    %1897 = vmatprep.subr.bf16.mxu0 %v1373
    %1898 = vmatpush1.bf16.msra.mxu0 %v1372
    %1899 = vmatprep.subr.bf16.mxu0 %v1377
    %1900 = vmatpush1.bf16.msra.mxu0 %v1376
    %1901 = vmatprep.subr.bf16.mxu0 %v1381
    %1902 = vmatpush1.bf16.msra.mxu0 %v1380
    %1903 = vmatprep.subr.bf16.mxu0 %v1385
    %1904 = vmatpush1.bf16.msra.mxu0 %v1384
    %1905 = vmatprep.subr.bf16.mxu0 %v1389
    %1906 = vmatpush1.bf16.msra.mxu0 %v1388
    %1907 = vmatprep.subr.bf16.mxu0 %v1393
    %1908 = vmatpush1.bf16.msra.mxu0 %v1392
    %1909 = vmatprep.subr.bf16.mxu0 %v1397
    %1910 = vmatpush1.bf16.msra.mxu0 %v1396
    %1911 = vmatprep.subr.bf16.mxu0 %v1401
    %1912 = vmatpush1.bf16.msra.mxu0 %v1400
    %1913 = vmatprep.subr.bf16.mxu0 %v1405
    %1914 = vmatpush1.bf16.msra.mxu0 %v1404
    %1915 = vmatprep.mubr.bf16.mxu0 %v103
    %1916 = vmatmul.mubr.bf16.gmra.mrb[0].mxu0 %v102
    %v1917 = vpop.f32.mrb[0].mxu0
    %v1918 = vadd.f32 %v1845, %v1917
    %v1919 = vpop.f32.mrb[0].mxu0
    %v1920 = vadd.f32 %v1847, %v1919
    %v1921 = vpop.f32.mrb[0].mxu0
    %v1922 = vadd.f32 %v1849, %v1921
    %v1923 = vpop.f32.mrb[0].mxu0
    %v1924 = vadd.f32 %v1851, %v1923
    %1925 = vmatprep.mubr.bf16.mxu0 %v111
    %1926 = vmatmul.mubr.bf16.gmra.mrb[0].mxu0 %v110
    %v1927 = vpop.f32.mrb[0].mxu0
    %v1928 = vadd.f32 %v1855, %v1927
    %v1929 = vpop.f32.mrb[0].mxu0
    %v1930 = vadd.f32 %v1857, %v1929
    %v1931 = vpop.f32.mrb[0].mxu0
    %v1932 = vadd.f32 %v1859, %v1931
    %v1933 = vpop.f32.mrb[0].mxu0
    %v1934 = vadd.f32 %v1861, %v1933
    %1935 = vmatprep.mubr.bf16.mxu0 %v119
    %1936 = vmatmul.mubr.bf16.gmra.mrb[0].mxu0 %v118
    %v1937 = vpop.f32.mrb[0].mxu0
    %v1938 = vadd.f32 %v1865, %v1937
    %v1939 = vpop.f32.mrb[0].mxu0
    %v1940 = vadd.f32 %v1867, %v1939
    %v1941 = vpop.f32.mrb[0].mxu0
    %v1942 = vadd.f32 %v1869, %v1941
    %v1943 = vpop.f32.mrb[0].mxu0
    %v1944 = vadd.f32 %v1871, %v1943
    %1945 = vmatprep.mubr.bf16.mxu0 %v127
    %1946 = vmatmul.mubr.bf16.gmra.mrb[0].mxu0 %v126
    %v1947 = vpop.f32.mrb[0].mxu0
    %v1948 = vadd.f32 %v1875, %v1947
    %v1949 = vpop.f32.mrb[0].mxu0
    %v1950 = vadd.f32 %v1877, %v1949
    %v1951 = vpop.f32.mrb[0].mxu0
    %v1952 = vadd.f32 %v1879, %v1951
    %v1953 = vpop.f32.mrb[0].mxu0
    %v1954 = vadd.f32 %v1881, %v1953
    %1955 = vdwg.mxu0
    %1956 = vmatprep.subr.bf16.mxu0 %v1155
    %1957 = vmatpush1.bf16.msra.mxu0 %v1154
    %1958 = vmatprep.subr.bf16.mxu0 %v1159
    %1959 = vmatpush1.bf16.msra.mxu0 %v1158
    %1960 = vmatprep.subr.bf16.mxu0 %v1163
    %1961 = vmatpush1.bf16.msra.mxu0 %v1162
    %1962 = vmatprep.subr.bf16.mxu0 %v1167
    %1963 = vmatpush1.bf16.msra.mxu0 %v1166
    %1964 = vmatprep.subr.bf16.mxu0 %v1171
    %1965 = vmatpush1.bf16.msra.mxu0 %v1170
    %1966 = vmatprep.subr.bf16.mxu0 %v1175
    %1967 = vmatpush1.bf16.msra.mxu0 %v1174
    %1968 = vmatprep.subr.bf16.mxu0 %v1179
    %1969 = vmatpush1.bf16.msra.mxu0 %v1178
    %1970 = vmatprep.subr.bf16.mxu0 %v1183
    %1971 = vmatpush1.bf16.msra.mxu0 %v1182
    %1972 = vmatprep.subr.bf16.mxu0 %v1187
    %1973 = vmatpush1.bf16.msra.mxu0 %v1186
    %1974 = vmatprep.subr.bf16.mxu0 %v1191
    %1975 = vmatpush1.bf16.msra.mxu0 %v1190
    %1976 = vmatprep.subr.bf16.mxu0 %v1195
    %1977 = vmatpush1.bf16.msra.mxu0 %v1194
    %1978 = vmatprep.subr.bf16.mxu0 %v1199
    %1979 = vmatpush1.bf16.msra.mxu0 %v1198
    %1980 = vmatprep.subr.bf16.mxu0 %v1203
    %1981 = vmatpush1.bf16.msra.mxu0 %v1202
    %1982 = vmatprep.subr.bf16.mxu0 %v1207
    %1983 = vmatpush1.bf16.msra.mxu0 %v1206
    %1984 = vmatprep.subr.bf16.mxu0 %v1211
    %1985 = vmatpush1.bf16.msra.mxu0 %v1210
    %1986 = vmatprep.subr.bf16.mxu0 %v1215
    %1987 = vmatpush1.bf16.msra.mxu0 %v1214
    %1988 = vmatprep.mubr.bf16.mxu0 %v97
    %1989 = vmatmul.mubr.bf16.gmra.mrb[0].mxu0 %v96
    %v1990 = vpop.f32.mrb[0].mxu0
    %v1991 = vadd.f32 0.0, %v1990
    %v1992 = vpop.f32.mrb[0].mxu0
    %v1993 = vadd.f32 0.0, %v1992
    %v1994 = vpop.f32.mrb[0].mxu0
    %v1995 = vadd.f32 0.0, %v1994
    %v1996 = vpop.f32.mrb[0].mxu0
    %v1997 = vadd.f32 0.0, %v1996
    %1998 = vmatprep.mubr.bf16.mxu0 %v105
    %1999 = vmatmul.mubr.bf16.gmra.mrb[0].mxu0 %v104
    %v2000 = vpop.f32.mrb[0].mxu0
    %v2001 = vadd.f32 0.0, %v2000
    %v2002 = vpop.f32.mrb[0].mxu0
    %v2003 = vadd.f32 0.0, %v2002
    %v2004 = vpop.f32.mrb[0].mxu0
    %v2005 = vadd.f32 0.0, %v2004
    %v2006 = vpop.f32.mrb[0].mxu0
    %v2007 = vadd.f32 0.0, %v2006
    %2008 = vmatprep.mubr.bf16.mxu0 %v113
    %2009 = vmatmul.mubr.bf16.gmra.mrb[0].mxu0 %v112
    %v2010 = vpop.f32.mrb[0].mxu0
    %v2011 = vadd.f32 0.0, %v2010
    %v2012 = vpop.f32.mrb[0].mxu0
    %v2013 = vadd.f32 0.0, %v2012
    %v2014 = vpop.f32.mrb[0].mxu0
    %v2015 = vadd.f32 0.0, %v2014
    %v2016 = vpop.f32.mrb[0].mxu0
    %v2017 = vadd.f32 0.0, %v2016
    %2018 = vmatprep.mubr.bf16.mxu0 %v121
    %2019 = vmatmul.mubr.bf16.gmra.mrb[0].mxu0 %v120
    %v2020 = vpop.f32.mrb[0].mxu0
    %v2021 = vadd.f32 0.0, %v2020
    %v2022 = vpop.f32.mrb[0].mxu0
    %v2023 = vadd.f32 0.0, %v2022
    %v2024 = vpop.f32.mrb[0].mxu0
    %v2025 = vadd.f32 0.0, %v2024
    %v2026 = vpop.f32.mrb[0].mxu0
    %v2027 = vadd.f32 0.0, %v2026
    %2028 = vdwg.mxu0
    %2029 = vmatprep.subr.bf16.mxu0 %v1219
    %2030 = vmatpush1.bf16.msra.mxu0 %v1218
    %2031 = vmatprep.subr.bf16.mxu0 %v1223
    %2032 = vmatpush1.bf16.msra.mxu0 %v1222
    %2033 = vmatprep.subr.bf16.mxu0 %v1227
    %2034 = vmatpush1.bf16.msra.mxu0 %v1226
    %2035 = vmatprep.subr.bf16.mxu0 %v1231
    %2036 = vmatpush1.bf16.msra.mxu0 %v1230
    %2037 = vmatprep.subr.bf16.mxu0 %v1235
    %2038 = vmatpush1.bf16.msra.mxu0 %v1234
    %2039 = vmatprep.subr.bf16.mxu0 %v1239
    %2040 = vmatpush1.bf16.msra.mxu0 %v1238
    %2041 = vmatprep.subr.bf16.mxu0 %v1243
    %2042 = vmatpush1.bf16.msra.mxu0 %v1242
    %2043 = vmatprep.subr.bf16.mxu0 %v1247
    %2044 = vmatpush1.bf16.msra.mxu0 %v1246
    %2045 = vmatprep.subr.bf16.mxu0 %v1251
    %2046 = vmatpush1.bf16.msra.mxu0 %v1250
    %2047 = vmatprep.subr.bf16.mxu0 %v1255
    %2048 = vmatpush1.bf16.msra.mxu0 %v1254
    %2049 = vmatprep.subr.bf16.mxu0 %v1259
    %2050 = vmatpush1.bf16.msra.mxu0 %v1258
    %2051 = vmatprep.subr.bf16.mxu0 %v1263
    %2052 = vmatpush1.bf16.msra.mxu0 %v1262
    %2053 = vmatprep.subr.bf16.mxu0 %v1267
    %2054 = vmatpush1.bf16.msra.mxu0 %v1266
    %2055 = vmatprep.subr.bf16.mxu0 %v1271
    %2056 = vmatpush1.bf16.msra.mxu0 %v1270
    %2057 = vmatprep.subr.bf16.mxu0 %v1275
    %2058 = vmatpush1.bf16.msra.mxu0 %v1274
    %2059 = vmatprep.subr.bf16.mxu0 %v1279
    %2060 = vmatpush1.bf16.msra.mxu0 %v1278
    %2061 = vmatprep.mubr.bf16.mxu0 %v99
    %2062 = vmatmul.mubr.bf16.gmra.mrb[0].mxu0 %v98
    %v2063 = vpop.f32.mrb[0].mxu0
    %v2064 = vadd.f32 %v1991, %v2063
    %v2065 = vpop.f32.mrb[0].mxu0
    %v2066 = vadd.f32 %v1993, %v2065
    %v2067 = vpop.f32.mrb[0].mxu0
    %v2068 = vadd.f32 %v1995, %v2067
    %v2069 = vpop.f32.mrb[0].mxu0
    %v2070 = vadd.f32 %v1997, %v2069
    %2071 = vmatprep.mubr.bf16.mxu0 %v107
    %2072 = vmatmul.mubr.bf16.gmra.mrb[0].mxu0 %v106
    %v2073 = vpop.f32.mrb[0].mxu0
    %v2074 = vadd.f32 %v2001, %v2073
    %v2075 = vpop.f32.mrb[0].mxu0
    %v2076 = vadd.f32 %v2003, %v2075
    %v2077 = vpop.f32.mrb[0].mxu0
    %v2078 = vadd.f32 %v2005, %v2077
    %v2079 = vpop.f32.mrb[0].mxu0
    %v2080 = vadd.f32 %v2007, %v2079
    %2081 = vmatprep.mubr.bf16.mxu0 %v115
    %2082 = vmatmul.mubr.bf16.gmra.mrb[0].mxu0 %v114
    %v2083 = vpop.f32.mrb[0].mxu0
    %v2084 = vadd.f32 %v2011, %v2083
    %v2085 = vpop.f32.mrb[0].mxu0
    %v2086 = vadd.f32 %v2013, %v2085
    %v2087 = vpop.f32.mrb[0].mxu0
    %v2088 = vadd.f32 %v2015, %v2087
    %v2089 = vpop.f32.mrb[0].mxu0
    %v2090 = vadd.f32 %v2017, %v2089
    %2091 = vmatprep.mubr.bf16.mxu0 %v123
    %2092 = vmatmul.mubr.bf16.gmra.mrb[0].mxu0 %v122
    %v2093 = vpop.f32.mrb[0].mxu0
    %v2094 = vadd.f32 %v2021, %v2093
    %v2095 = vpop.f32.mrb[0].mxu0
    %v2096 = vadd.f32 %v2023, %v2095
    %v2097 = vpop.f32.mrb[0].mxu0
    %v2098 = vadd.f32 %v2025, %v2097
    %v2099 = vpop.f32.mrb[0].mxu0
    %v2100 = vadd.f32 %v2027, %v2099
    %2101 = vdwg.mxu0
    %2102 = vmatprep.subr.bf16.mxu0 %v1283
    %2103 = vmatpush1.bf16.msra.mxu0 %v1282
    %2104 = vmatprep.subr.bf16.mxu0 %v1287
    %2105 = vmatpush1.bf16.msra.mxu0 %v1286
    %2106 = vmatprep.subr.bf16.mxu0 %v1291
    %2107 = vmatpush1.bf16.msra.mxu0 %v1290
    %2108 = vmatprep.subr.bf16.mxu0 %v1295
    %2109 = vmatpush1.bf16.msra.mxu0 %v1294
    %2110 = vmatprep.subr.bf16.mxu0 %v1299
    %2111 = vmatpush1.bf16.msra.mxu0 %v1298
    %2112 = vmatprep.subr.bf16.mxu0 %v1303
    %2113 = vmatpush1.bf16.msra.mxu0 %v1302
    %2114 = vmatprep.subr.bf16.mxu0 %v1307
    %2115 = vmatpush1.bf16.msra.mxu0 %v1306
    %2116 = vmatprep.subr.bf16.mxu0 %v1311
    %2117 = vmatpush1.bf16.msra.mxu0 %v1310
    %2118 = vmatprep.subr.bf16.mxu0 %v1315
    %2119 = vmatpush1.bf16.msra.mxu0 %v1314
    %2120 = vmatprep.subr.bf16.mxu0 %v1319
    %2121 = vmatpush1.bf16.msra.mxu0 %v1318
    %2122 = vmatprep.subr.bf16.mxu0 %v1323
    %2123 = vmatpush1.bf16.msra.mxu0 %v1322
    %2124 = vmatprep.subr.bf16.mxu0 %v1327
    %2125 = vmatpush1.bf16.msra.mxu0 %v1326
    %2126 = vmatprep.subr.bf16.mxu0 %v1331
    %2127 = vmatpush1.bf16.msra.mxu0 %v1330
    %2128 = vmatprep.subr.bf16.mxu0 %v1335
    %2129 = vmatpush1.bf16.msra.mxu0 %v1334
    %2130 = vmatprep.subr.bf16.mxu0 %v1339
    %2131 = vmatpush1.bf16.msra.mxu0 %v1338
    %2132 = vmatprep.subr.bf16.mxu0 %v1343
    %2133 = vmatpush1.bf16.msra.mxu0 %v1342
    %2134 = vmatprep.mubr.bf16.mxu0 %v101
    %2135 = vmatmul.mubr.bf16.gmra.mrb[0].mxu0 %v100
    %v2136 = vpop.f32.mrb[0].mxu0
    %v2137 = vadd.f32 %v2064, %v2136
    %v2138 = vpop.f32.mrb[0].mxu0
    %v2139 = vadd.f32 %v2066, %v2138
    %v2140 = vpop.f32.mrb[0].mxu0
    %v2141 = vadd.f32 %v2068, %v2140
    %v2142 = vpop.f32.mrb[0].mxu0
    %v2143 = vadd.f32 %v2070, %v2142
    %2144 = vmatprep.mubr.bf16.mxu0 %v109
    %2145 = vmatmul.mubr.bf16.gmra.mrb[0].mxu0 %v108
    %v2146 = vpop.f32.mrb[0].mxu0
    %v2147 = vadd.f32 %v2074, %v2146
    %v2148 = vpop.f32.mrb[0].mxu0
    %v2149 = vadd.f32 %v2076, %v2148
    %v2150 = vpop.f32.mrb[0].mxu0
    %v2151 = vadd.f32 %v2078, %v2150
    %v2152 = vpop.f32.mrb[0].mxu0
    %v2153 = vadd.f32 %v2080, %v2152
    %2154 = vmatprep.mubr.bf16.mxu0 %v117
    %2155 = vmatmul.mubr.bf16.gmra.mrb[0].mxu0 %v116
    %v2156 = vpop.f32.mrb[0].mxu0
    %v2157 = vadd.f32 %v2084, %v2156
    %v2158 = vpop.f32.mrb[0].mxu0
    %v2159 = vadd.f32 %v2086, %v2158
    %v2160 = vpop.f32.mrb[0].mxu0
    %v2161 = vadd.f32 %v2088, %v2160
    %v2162 = vpop.f32.mrb[0].mxu0
    %v2163 = vadd.f32 %v2090, %v2162
    %2164 = vmatprep.mubr.bf16.mxu0 %v125
    %2165 = vmatmul.mubr.bf16.gmra.mrb[0].mxu0 %v124
    %v2166 = vpop.f32.mrb[0].mxu0
    %v2167 = vadd.f32 %v2094, %v2166
    %v2168 = vpop.f32.mrb[0].mxu0
    %v2169 = vadd.f32 %v2096, %v2168
    %v2170 = vpop.f32.mrb[0].mxu0
    %v2171 = vadd.f32 %v2098, %v2170
    %v2172 = vpop.f32.mrb[0].mxu0
    %v2173 = vadd.f32 %v2100, %v2172
    %2174 = vdwg.mxu0
    %2175 = vmatprep.subr.bf16.mxu0 %v1347
    %2176 = vmatpush1.bf16.msra.mxu0 %v1346
    %2177 = vmatprep.subr.bf16.mxu0 %v1351
    %2178 = vmatpush1.bf16.msra.mxu0 %v1350
    %2179 = vmatprep.subr.bf16.mxu0 %v1355
    %2180 = vmatpush1.bf16.msra.mxu0 %v1354
    %2181 = vmatprep.subr.bf16.mxu0 %v1359
    %2182 = vmatpush1.bf16.msra.mxu0 %v1358
    %2183 = vmatprep.subr.bf16.mxu0 %v1363
    %2184 = vmatpush1.bf16.msra.mxu0 %v1362
    %2185 = vmatprep.subr.bf16.mxu0 %v1367
    %2186 = vmatpush1.bf16.msra.mxu0 %v1366
    %2187 = vmatprep.subr.bf16.mxu0 %v1371
    %2188 = vmatpush1.bf16.msra.mxu0 %v1370
    %2189 = vmatprep.subr.bf16.mxu0 %v1375
    %2190 = vmatpush1.bf16.msra.mxu0 %v1374
    %2191 = vmatprep.subr.bf16.mxu0 %v1379
    %2192 = vmatpush1.bf16.msra.mxu0 %v1378
    %2193 = vmatprep.subr.bf16.mxu0 %v1383
    %2194 = vmatpush1.bf16.msra.mxu0 %v1382
    %2195 = vmatprep.subr.bf16.mxu0 %v1387
    %2196 = vmatpush1.bf16.msra.mxu0 %v1386
    %2197 = vmatprep.subr.bf16.mxu0 %v1391
    %2198 = vmatpush1.bf16.msra.mxu0 %v1390
    %2199 = vmatprep.subr.bf16.mxu0 %v1395
    %2200 = vmatpush1.bf16.msra.mxu0 %v1394
    %2201 = vmatprep.subr.bf16.mxu0 %v1399
    %2202 = vmatpush1.bf16.msra.mxu0 %v1398
    %2203 = vmatprep.subr.bf16.mxu0 %v1403
    %2204 = vmatpush1.bf16.msra.mxu0 %v1402
    %2205 = vmatprep.subr.bf16.mxu0 %v1407
    %2206 = vmatpush1.bf16.msra.mxu0 %v1406
    %2207 = vmatprep.mubr.bf16.mxu0 %v103
    %2208 = vmatmul.mubr.bf16.gmra.mrb[0].mxu0 %v102
    %v2209 = vpop.f32.mrb[0].mxu0
    %v2210 = vadd.f32 %v2137, %v2209
    %v2211 = vpop.f32.mrb[0].mxu0
    %v2212 = vadd.f32 %v2139, %v2211
    %v2213 = vpop.f32.mrb[0].mxu0
    %v2214 = vadd.f32 %v2141, %v2213
    %v2215 = vpop.f32.mrb[0].mxu0
    %v2216 = vadd.f32 %v2143, %v2215
    %2217 = vmatprep.mubr.bf16.mxu0 %v111
    %2218 = vmatmul.mubr.bf16.gmra.mrb[0].mxu0 %v110
    %v2219 = vpop.f32.mrb[0].mxu0
    %v2220 = vadd.f32 %v2147, %v2219
    %v2221 = vpop.f32.mrb[0].mxu0
    %v2222 = vadd.f32 %v2149, %v2221
    %v2223 = vpop.f32.mrb[0].mxu0
    %v2224 = vadd.f32 %v2151, %v2223
    %v2225 = vpop.f32.mrb[0].mxu0
    %v2226 = vadd.f32 %v2153, %v2225
    %2227 = vmatprep.mubr.bf16.mxu0 %v119
    %2228 = vmatmul.mubr.bf16.gmra.mrb[0].mxu0 %v118
    %v2229 = vpop.f32.mrb[0].mxu0
    %v2230 = vadd.f32 %v2157, %v2229
    %v2231 = vpop.f32.mrb[0].mxu0
    %v2232 = vadd.f32 %v2159, %v2231
    %v2233 = vpop.f32.mrb[0].mxu0
    %v2234 = vadd.f32 %v2161, %v2233
    %v2235 = vpop.f32.mrb[0].mxu0
    %v2236 = vadd.f32 %v2163, %v2235
    %2237 = vmatprep.mubr.bf16.mxu0 %v127
    %2238 = vmatmul.mubr.bf16.gmra.mrb[0].mxu0 %v126
    %v2239 = vpop.f32.mrb[0].mxu0
    %v2240 = vadd.f32 %v2167, %v2239
    %v2241 = vpop.f32.mrb[0].mxu0
    %v2242 = vadd.f32 %v2169, %v2241
    %v2243 = vpop.f32.mrb[0].mxu0
    %v2244 = vadd.f32 %v2171, %v2243
    %v2245 = vpop.f32.mrb[0].mxu0
    %v2246 = vadd.f32 %v2173, %v2245
    %2247 = vdwg.mxu0
    %v2248 = vpack.c.bf16 %v1922, %v1918
    %v2249 = vpack.c.bf16 %v1924, %v1920
    %v2250 = vpack.c.bf16 %v2214, %v2210
    %v2251 = vpack.c.bf16 %v2216, %v2212
    %v2252 = vpack.c.bf16 %v1932, %v1928
    %v2253 = vpack.c.bf16 %v1934, %v1930
    %v2254 = vpack.c.bf16 %v2224, %v2220
    %v2255 = vpack.c.bf16 %v2226, %v2222
    %v2256 = vpack.c.bf16 %v1942, %v1938
    %v2257 = vpack.c.bf16 %v1944, %v1940
    %v2258 = vpack.c.bf16 %v2234, %v2230
    %v2259 = vpack.c.bf16 %v2236, %v2232
    %v2260 = vpack.c.bf16 %v1952, %v1948
    %v2261 = vpack.c.bf16 %v1954, %v1950
    %v2262 = vpack.c.bf16 %v2244, %v2240
    %v2263 = vpack.c.bf16 %v2246, %v2242
    %v2264 = vld [vmem:[%s2] sm:$0xf]
    %v2265 = vld [vmem:[%s2 + $0x4] sm:$0xf]
    %v2266 = vld [vmem:[%s2 + $0x8] sm:$0xf]
    %v2267 = vld [vmem:[%s2 + $0xc] sm:$0xf]
    %v2268 = vld [vmem:[%s2 + $0x10] sm:$0xf]
    %v2269 = vld [vmem:[%s2 + $0x14] sm:$0xf]
    %v2270 = vld [vmem:[%s2 + $0x18] sm:$0xf]
    %v2271 = vld [vmem:[%s2 + $0x1c] sm:$0xf]
    %v2272 = vld [vmem:[%s2 + $0x20] sm:$0xf]
    %v2273 = vld [vmem:[%s2 + $0x24] sm:$0xf]
    %v2274 = vld [vmem:[%s2 + $0x28] sm:$0xf]
    %v2275 = vld [vmem:[%s2 + $0x2c] sm:$0xf]
    %v2276 = vld [vmem:[%s2 + $0x30] sm:$0xf]
    %v2277 = vld [vmem:[%s2 + $0x34] sm:$0xf]
    %v2278 = vld [vmem:[%s2 + $0x38] sm:$0xf]
    %v2279 = vld [vmem:[%s2 + $0x3c] sm:$0xf]
    %v2280 = vld [vmem:[%s2 + $0x40] sm:$0xf]
    %v2281 = vld [vmem:[%s2 + $0x44] sm:$0xf]
    %v2282 = vld [vmem:[%s2 + $0x48] sm:$0xf]
    %v2283 = vld [vmem:[%s2 + $0x4c] sm:$0xf]
    %v2284 = vld [vmem:[%s2 + $0x50] sm:$0xf]
    %v2285 = vld [vmem:[%s2 + $0x54] sm:$0xf]
    %v2286 = vld [vmem:[%s2 + $0x58] sm:$0xf]
    %v2287 = vld [vmem:[%s2 + $0x5c] sm:$0xf]
    %v2288 = vld [vmem:[%s2 + $0x60] sm:$0xf]
    %v2289 = vld [vmem:[%s2 + $0x64] sm:$0xf]
    %v2290 = vld [vmem:[%s2 + $0x68] sm:$0xf]
    %v2291 = vld [vmem:[%s2 + $0x6c] sm:$0xf]
    %v2292 = vld [vmem:[%s2 + $0x70] sm:$0xf]
    %v2293 = vld [vmem:[%s2 + $0x74] sm:$0xf]
    %v2294 = vld [vmem:[%s2 + $0x78] sm:$0xf]
    %v2295 = vld [vmem:[%s2 + $0x7c] sm:$0xf]
    %v2296 = vld [vmem:[%s2 + $0x80] sm:$0xf]
    %v2297 = vld [vmem:[%s2 + $0x84] sm:$0xf]
    %v2298 = vld [vmem:[%s2 + $0x88] sm:$0xf]
    %v2299 = vld [vmem:[%s2 + $0x8c] sm:$0xf]
    %v2300 = vld [vmem:[%s2 + $0x90] sm:$0xf]
    %v2301 = vld [vmem:[%s2 + $0x94] sm:$0xf]
    %v2302 = vld [vmem:[%s2 + $0x98] sm:$0xf]
    %v2303 = vld [vmem:[%s2 + $0x9c] sm:$0xf]
    %v2304 = vld [vmem:[%s2 + $0xa0] sm:$0xf]
    %v2305 = vld [vmem:[%s2 + $0xa4] sm:$0xf]
    %v2306 = vld [vmem:[%s2 + $0xa8] sm:$0xf]
    %v2307 = vld [vmem:[%s2 + $0xac] sm:$0xf]
    %v2308 = vld [vmem:[%s2 + $0xb0] sm:$0xf]
    %v2309 = vld [vmem:[%s2 + $0xb4] sm:$0xf]
    %v2310 = vld [vmem:[%s2 + $0xb8] sm:$0xf]
    %v2311 = vld [vmem:[%s2 + $0xbc] sm:$0xf]
    %v2312 = vld [vmem:[%s2 + $0xc0] sm:$0xf]
    %v2313 = vld [vmem:[%s2 + $0xc4] sm:$0xf]
    %v2314 = vld [vmem:[%s2 + $0xc8] sm:$0xf]
    %v2315 = vld [vmem:[%s2 + $0xcc] sm:$0xf]
    %v2316 = vld [vmem:[%s2 + $0xd0] sm:$0xf]
    %v2317 = vld [vmem:[%s2 + $0xd4] sm:$0xf]
    %v2318 = vld [vmem:[%s2 + $0xd8] sm:$0xf]
    %v2319 = vld [vmem:[%s2 + $0xdc] sm:$0xf]
    %v2320 = vld [vmem:[%s2 + $0xe0] sm:$0xf]
    %v2321 = vld [vmem:[%s2 + $0xe4] sm:$0xf]
    %v2322 = vld [vmem:[%s2 + $0xe8] sm:$0xf]
    %v2323 = vld [vmem:[%s2 + $0xec] sm:$0xf]
    %v2324 = vld [vmem:[%s2 + $0xf0] sm:$0xf]
    %v2325 = vld [vmem:[%s2 + $0xf4] sm:$0xf]
    %v2326 = vld [vmem:[%s2 + $0xf8] sm:$0xf]
    %v2327 = vld [vmem:[%s2 + $0xfc] sm:$0xf]
    %v2392 = vunpack.c.l.b16 %v2264
    %v2393 = vunpack.c.l.b16 %v2265
    %v2394 = vunpack.c.l.b16 %v2266
    %v2395 = vunpack.c.l.b16 %v2267
    %v2396 = vunpack.c.l.b16 %v2268
    %v2397 = vunpack.c.l.b16 %v2269
    %v2398 = vunpack.c.l.b16 %v2270
    %v2399 = vunpack.c.l.b16 %v2271
    %v2400 = vunpack.c.l.b16 %v2272
    %v2401 = vunpack.c.l.b16 %v2273
    %v2402 = vunpack.c.l.b16 %v2274
    %v2403 = vunpack.c.l.b16 %v2275
    %v2404 = vunpack.c.l.b16 %v2276
    %v2405 = vunpack.c.l.b16 %v2277
    %v2406 = vunpack.c.l.b16 %v2278
    %v2407 = vunpack.c.l.b16 %v2279
    %v2408 = vunpack.c.l.b16 %v2280
    %v2409 = vunpack.c.l.b16 %v2281
    %v2410 = vunpack.c.l.b16 %v2282
    %v2411 = vunpack.c.l.b16 %v2283
    %v2412 = vunpack.c.l.b16 %v2284
    %v2413 = vunpack.c.l.b16 %v2285
    %v2414 = vunpack.c.l.b16 %v2286
    %v2415 = vunpack.c.l.b16 %v2287
    %v2416 = vunpack.c.l.b16 %v2288
    %v2417 = vunpack.c.l.b16 %v2289
    %v2418 = vunpack.c.l.b16 %v2290
    %v2419 = vunpack.c.l.b16 %v2291
    %v2420 = vunpack.c.l.b16 %v2292
    %v2421 = vunpack.c.l.b16 %v2293
    %v2422 = vunpack.c.l.b16 %v2294
    %v2423 = vunpack.c.l.b16 %v2295
    %v2424 = vunpack.c.l.b16 %v2296
    %v2425 = vunpack.c.l.b16 %v2297
    %v2426 = vunpack.c.l.b16 %v2298
    %v2427 = vunpack.c.l.b16 %v2299
    %v2428 = vunpack.c.l.b16 %v2300
    %v2429 = vunpack.c.l.b16 %v2301
    %v2430 = vunpack.c.l.b16 %v2302
    %v2431 = vunpack.c.l.b16 %v2303
    %v2432 = vunpack.c.l.b16 %v2304
    %v2433 = vunpack.c.l.b16 %v2305
    %v2434 = vunpack.c.l.b16 %v2306
    %v2435 = vunpack.c.l.b16 %v2307
    %v2436 = vunpack.c.l.b16 %v2308
    %v2437 = vunpack.c.l.b16 %v2309
    %v2438 = vunpack.c.l.b16 %v2310
    %v2439 = vunpack.c.l.b16 %v2311
    %v2440 = vunpack.c.l.b16 %v2312
    %v2441 = vunpack.c.l.b16 %v2313
    %v2442 = vunpack.c.l.b16 %v2314
    %v2443 = vunpack.c.l.b16 %v2315
    %v2444 = vunpack.c.l.b16 %v2316
    %v2445 = vunpack.c.l.b16 %v2317
    %v2446 = vunpack.c.l.b16 %v2318
    %v2447 = vunpack.c.l.b16 %v2319
    %v2448 = vunpack.c.l.b16 %v2320
    %v2449 = vunpack.c.l.b16 %v2321
    %v2450 = vunpack.c.l.b16 %v2322
    %v2451 = vunpack.c.l.b16 %v2323
    %v2452 = vunpack.c.l.b16 %v2324
    %v2453 = vunpack.c.l.b16 %v2325
    %v2454 = vunpack.c.l.b16 %v2326
    %v2455 = vunpack.c.l.b16 %v2327
    %v2456 = vpack.c.b16 %v2393, %v2392
    %v2457 = vpack.c.b16 %v2395, %v2394
    %v2458 = vpack.c.b16 %v2397, %v2396
    %v2459 = vpack.c.b16 %v2399, %v2398
    %v2460 = vpack.c.b16 %v2401, %v2400
    %v2461 = vpack.c.b16 %v2403, %v2402
    %v2462 = vpack.c.b16 %v2405, %v2404
    %v2463 = vpack.c.b16 %v2407, %v2406
    %v2464 = vpack.c.b16 %v2409, %v2408
    %v2465 = vpack.c.b16 %v2411, %v2410
    %v2466 = vpack.c.b16 %v2413, %v2412
    %v2467 = vpack.c.b16 %v2415, %v2414
    %v2468 = vpack.c.b16 %v2417, %v2416
    %v2469 = vpack.c.b16 %v2419, %v2418
    %v2470 = vpack.c.b16 %v2421, %v2420
    %v2471 = vpack.c.b16 %v2423, %v2422
    %v2472 = vpack.c.b16 %v2425, %v2424
    %v2473 = vpack.c.b16 %v2427, %v2426
    %v2474 = vpack.c.b16 %v2429, %v2428
    %v2475 = vpack.c.b16 %v2431, %v2430
    %v2476 = vpack.c.b16 %v2433, %v2432
    %v2477 = vpack.c.b16 %v2435, %v2434
    %v2478 = vpack.c.b16 %v2437, %v2436
    %v2479 = vpack.c.b16 %v2439, %v2438
    %v2480 = vpack.c.b16 %v2441, %v2440
    %v2481 = vpack.c.b16 %v2443, %v2442
    %v2482 = vpack.c.b16 %v2445, %v2444
    %v2483 = vpack.c.b16 %v2447, %v2446
    %v2484 = vpack.c.b16 %v2449, %v2448
    %v2485 = vpack.c.b16 %v2451, %v2450
    %v2486 = vpack.c.b16 %v2453, %v2452
    %v2487 = vpack.c.b16 %v2455, %v2454
    %2520 = vmatprep.subr.bf16.mxu0 0
    %2521 = vmatpush1.bf16.msra.mxu0 %v2456
    %2522 = vmatprep.subr.bf16.mxu0 0
    %2523 = vmatpush1.bf16.msra.mxu0 %v2457
    %2524 = vmatprep.subr.bf16.mxu0 0
    %2525 = vmatpush1.bf16.msra.mxu0 %v2458
    %2526 = vmatprep.subr.bf16.mxu0 0
    %2527 = vmatpush1.bf16.msra.mxu0 %v2459
    %2528 = vmatprep.subr.bf16.mxu0 0
    %2529 = vmatpush1.bf16.msra.mxu0 %v2460
    %2530 = vmatprep.subr.bf16.mxu0 0
    %2531 = vmatpush1.bf16.msra.mxu0 %v2461
    %2532 = vmatprep.subr.bf16.mxu0 0
    %2533 = vmatpush1.bf16.msra.mxu0 %v2462
    %2534 = vmatprep.subr.bf16.mxu0 0
    %2535 = vmatpush1.bf16.msra.mxu0 %v2463
    %2536 = vmatprep.subr.bf16.mxu0 0
    %2537 = vmatpush1.bf16.msra.mxu0 %v2464
    %2538 = vmatprep.subr.bf16.mxu0 0
    %2539 = vmatpush1.bf16.msra.mxu0 %v2465
    %2540 = vmatprep.subr.bf16.mxu0 0
    %2541 = vmatpush1.bf16.msra.mxu0 %v2466
    %2542 = vmatprep.subr.bf16.mxu0 0
    %2543 = vmatpush1.bf16.msra.mxu0 %v2467
    %2544 = vmatprep.subr.bf16.mxu0 0
    %2545 = vmatpush1.bf16.msra.mxu0 %v2468
    %2546 = vmatprep.subr.bf16.mxu0 0
    %2547 = vmatpush1.bf16.msra.mxu0 %v2469
    %2548 = vmatprep.subr.bf16.mxu0 0
    %2549 = vmatpush1.bf16.msra.mxu0 %v2470
    %2550 = vmatprep.subr.bf16.mxu0 0
    %2551 = vmatpush1.bf16.msra.mxu0 %v2471
    %2552 = vmatprep.mubr.bf16.mxu0 %v2249
    %2553 = vmatmul.mubr.bf16.gmra.mrb[0].mxu0 %v2248
    %v2554 = vpop.f32.mrb[0].mxu0
    %v2555 = vadd.f32 0.0, %v2554
    %v2556 = vpop.f32.mrb[0].mxu0
    %v2557 = vpop.f32.mrb[0].mxu0
    %v2558 = vadd.f32 0.0, %v2557
    %v2559 = vpop.f32.mrb[0].mxu0
    %2560 = vmatprep.mubr.bf16.mxu0 %v2253
    %2561 = vmatmul.mubr.bf16.gmra.mrb[0].mxu0 %v2252
    %v2562 = vpop.f32.mrb[0].mxu0
    %v2563 = vadd.f32 0.0, %v2562
    %v2564 = vpop.f32.mrb[0].mxu0
    %v2565 = vpop.f32.mrb[0].mxu0
    %v2566 = vadd.f32 0.0, %v2565
    %v2567 = vpop.f32.mrb[0].mxu0
    %2568 = vmatprep.mubr.bf16.mxu0 %v2257
    %2569 = vmatmul.mubr.bf16.gmra.mrb[0].mxu0 %v2256
    %v2570 = vpop.f32.mrb[0].mxu0
    %v2571 = vadd.f32 0.0, %v2570
    %v2572 = vpop.f32.mrb[0].mxu0
    %v2573 = vpop.f32.mrb[0].mxu0
    %v2574 = vadd.f32 0.0, %v2573
    %v2575 = vpop.f32.mrb[0].mxu0
    %2576 = vmatprep.mubr.bf16.mxu0 %v2261
    %2577 = vmatmul.mubr.bf16.gmra.mrb[0].mxu0 %v2260
    %v2578 = vpop.f32.mrb[0].mxu0
    %v2579 = vadd.f32 0.0, %v2578
    %v2580 = vpop.f32.mrb[0].mxu0
    %v2581 = vpop.f32.mrb[0].mxu0
    %v2582 = vadd.f32 0.0, %v2581
    %v2583 = vpop.f32.mrb[0].mxu0
    %2584 = vdwg.mxu0
    %2585 = vmatprep.subr.bf16.mxu0 0
    %2586 = vmatpush1.bf16.msra.mxu0 %v2472
    %2587 = vmatprep.subr.bf16.mxu0 0
    %2588 = vmatpush1.bf16.msra.mxu0 %v2473
    %2589 = vmatprep.subr.bf16.mxu0 0
    %2590 = vmatpush1.bf16.msra.mxu0 %v2474
    %2591 = vmatprep.subr.bf16.mxu0 0
    %2592 = vmatpush1.bf16.msra.mxu0 %v2475
    %2593 = vmatprep.subr.bf16.mxu0 0
    %2594 = vmatpush1.bf16.msra.mxu0 %v2476
    %2595 = vmatprep.subr.bf16.mxu0 0
    %2596 = vmatpush1.bf16.msra.mxu0 %v2477
    %2597 = vmatprep.subr.bf16.mxu0 0
    %2598 = vmatpush1.bf16.msra.mxu0 %v2478
    %2599 = vmatprep.subr.bf16.mxu0 0
    %2600 = vmatpush1.bf16.msra.mxu0 %v2479
    %2601 = vmatprep.subr.bf16.mxu0 0
    %2602 = vmatpush1.bf16.msra.mxu0 %v2480
    %2603 = vmatprep.subr.bf16.mxu0 0
    %2604 = vmatpush1.bf16.msra.mxu0 %v2481
    %2605 = vmatprep.subr.bf16.mxu0 0
    %2606 = vmatpush1.bf16.msra.mxu0 %v2482
    %2607 = vmatprep.subr.bf16.mxu0 0
    %2608 = vmatpush1.bf16.msra.mxu0 %v2483
    %2609 = vmatprep.subr.bf16.mxu0 0
    %2610 = vmatpush1.bf16.msra.mxu0 %v2484
    %2611 = vmatprep.subr.bf16.mxu0 0
    %2612 = vmatpush1.bf16.msra.mxu0 %v2485
    %2613 = vmatprep.subr.bf16.mxu0 0
    %2614 = vmatpush1.bf16.msra.mxu0 %v2486
    %2615 = vmatprep.subr.bf16.mxu0 0
    %2616 = vmatpush1.bf16.msra.mxu0 %v2487
    %2617 = vmatprep.mubr.bf16.mxu0 %v2251
    %2618 = vmatmul.mubr.bf16.gmra.mrb[0].mxu0 %v2250
    %v2619 = vpop.f32.mrb[0].mxu0
    %v2620 = vadd.f32 %v2555, %v2619
    %v2621 = vpop.f32.mrb[0].mxu0
    %v2622 = vpop.f32.mrb[0].mxu0
    %v2623 = vadd.f32 %v2558, %v2622
    %v2624 = vpop.f32.mrb[0].mxu0
    %2625 = vmatprep.mubr.bf16.mxu0 %v2255
    %2626 = vmatmul.mubr.bf16.gmra.mrb[0].mxu0 %v2254
    %v2627 = vpop.f32.mrb[0].mxu0
    %v2628 = vadd.f32 %v2563, %v2627
    %v2629 = vpop.f32.mrb[0].mxu0
    %v2630 = vpop.f32.mrb[0].mxu0
    %v2631 = vadd.f32 %v2566, %v2630
    %v2632 = vpop.f32.mrb[0].mxu0
    %2633 = vmatprep.mubr.bf16.mxu0 %v2259
    %2634 = vmatmul.mubr.bf16.gmra.mrb[0].mxu0 %v2258
    %v2635 = vpop.f32.mrb[0].mxu0
    %v2636 = vadd.f32 %v2571, %v2635
    %v2637 = vpop.f32.mrb[0].mxu0
    %v2638 = vpop.f32.mrb[0].mxu0
    %v2639 = vadd.f32 %v2574, %v2638
    %v2640 = vpop.f32.mrb[0].mxu0
    %2641 = vmatprep.mubr.bf16.mxu0 %v2263
    %2642 = vmatmul.mubr.bf16.gmra.mrb[0].mxu0 %v2262
    %v2643 = vpop.f32.mrb[0].mxu0
    %v2644 = vadd.f32 %v2579, %v2643
    %v2645 = vpop.f32.mrb[0].mxu0
    %v2646 = vpop.f32.mrb[0].mxu0
    %v2647 = vadd.f32 %v2582, %v2646
    %v2648 = vpop.f32.mrb[0].mxu0
    %2649 = vdwg.mxu0
    %v2650 = vlaneseq
    %v2651 = vshrl.u32 %v2650, 7
    %v2652 = vlaneseq
    %v2653 = vand.u32 %v2652, 127
    %v2654 = vmul.u32 %v2651, 32
    %vm2655 = vcmp.ge.s32.totalorder %v2653, %v2654
    %v2656 = vadd.s32 %v2651, 1
    %v2657 = vmul.u32 %v2656, 32
    %vm2658 = vcmp.lt.s32.totalorder %v2653, %v2657
    %vm2659 = vmand %vm2655, %vm2658
    %v2660 = vsel %vm2659, 1.0, 0.0
    %v2661 = vld [vmem:[%s3] sm:$0x1]
    %v2663 = vlaneseq
    %v2664 = vshrl.u32 %v2663, 7
    %v2665 = vsub.s32 0, %v2664
    %v2666 = vrot.slane %v2661, %v2665
    %vm2668 = vcmask 523264
    %v2670 = vsel %vm2668, %v2660, 0
    %2672 = vmatprep.subr.mxu0 0.0
    %2673 = vmatpush1.msra.mxu0 %v2620
    %2674 = vmatprep.subr.mxu0 0.0
    %2675 = vmatpush1.msra.mxu0 %v2623
    %2676 = vmatprep.subr.mxu0 0.0
    %2677 = vmatpush1.msra.mxu0 %v2628
    %2678 = vmatprep.subr.mxu0 0.0
    %2679 = vmatpush1.msra.mxu0 %v2631
    %2680 = vmatprep.subr.mxu0 0.0
    %2681 = vmatpush1.msra.mxu0 %v2636
    %2682 = vmatprep.subr.mxu0 0.0
    %2683 = vmatpush1.msra.mxu0 %v2639
    %2684 = vmatprep.subr.mxu0 0.0
    %2685 = vmatpush1.msra.mxu0 %v2644
    %2686 = vmatprep.subr.mxu0 0.0
    %2687 = vmatpush1.msra.mxu0 %v2647
    %2688 = vmatprep.subr.mxu0 0.0
    %2689 = vmatpush1.msra.mxu0 0.0
    %2690 = vmatprep.subr.mxu0 0.0
    %2691 = vmatpush1.msra.mxu0 0.0
    %2692 = vmatprep.subr.mxu0 0.0
    %2693 = vmatpush1.msra.mxu0 0.0
    %2694 = vmatprep.subr.mxu0 0.0
    %2695 = vmatpush1.msra.mxu0 0.0
    %2696 = vmatprep.subr.mxu0 0.0
    %2697 = vmatpush1.msra.mxu0 0.0
    %2698 = vmatprep.subr.mxu0 0.0
    %2699 = vmatpush1.msra.mxu0 0.0
    %2700 = vmatprep.subr.mxu0 0.0
    %2701 = vmatpush1.msra.mxu0 0.0
    %2702 = vmatprep.subr.mxu0 0.0
    %2703 = vmatpush1.msra.mxu0 0.0
    %2704 = vmatprep.subr.mxu0 0.0
    %2705 = vmatpush1.msra.mxu0 0.0
    %2706 = vmatprep.subr.mxu0 0.0
    %2707 = vmatpush1.msra.mxu0 0.0
    %2708 = vmatprep.subr.mxu0 0.0
    %2709 = vmatpush1.msra.mxu0 0.0
    %2710 = vmatprep.subr.mxu0 0.0
    %2711 = vmatpush1.msra.mxu0 0.0
    %2712 = vmatprep.subr.mxu0 0.0
    %2713 = vmatpush1.msra.mxu0 0.0
    %2714 = vmatprep.subr.mxu0 0.0
    %2715 = vmatpush1.msra.mxu0 0.0
    %2716 = vmatprep.subr.mxu0 0.0
    %2717 = vmatpush1.msra.mxu0 0.0
    %2718 = vmatprep.subr.mxu0 0.0
    %2719 = vmatpush1.msra.mxu0 0.0
    %2720 = vmatprep.subr.mxu0 0.0
    %2721 = vmatpush1.msra.mxu0 0.0
    %2722 = vmatprep.subr.mxu0 0.0
    %2723 = vmatpush1.msra.mxu0 0.0
    %2724 = vmatprep.subr.mxu0 0.0
    %2725 = vmatpush1.msra.mxu0 0.0
    %2726 = vmatprep.subr.mxu0 0.0
    %2727 = vmatpush1.msra.mxu0 0.0
    %2728 = vmatprep.subr.mxu0 0.0
    %2729 = vmatpush1.msra.mxu0 0.0
    %2730 = vmatprep.subr.mxu0 0.0
    %2731 = vmatpush1.msra.mxu0 0.0
    %2732 = vmatprep.subr.mxu0 0.0
    %2733 = vmatpush1.msra.mxu0 0.0
    %2734 = vmatprep.subr.mxu0 0.0
    %2735 = vmatpush1.msra.mxu0 0.0
    %2736 = vmatprep.mubr.f32.mxu0 0.0
    %2737 = vmatmul.mubr.f32.gmra.mrb[0].mxu0 %v2670
    %v2738 = vpop.f32.mrb[0].mxu0
    %v2739 = vadd.f32 %v2666, %v2738
    %v2740 = vpop.f32.mrb[0].mxu0
    %2741 = vdwg.mxu0
    %2742 = vst [vmem:[%s4] sm:$0xff] %v2739
    // Predicated region
    $region22: #{ft_net_swinv2_head.1} parent=1 // pred_check
      _
    $region23: #{ft_net_swinv2_head.1} parent=1 // pred_check_branch
      %2744 = sbr.rel (0) target = $region25
    $region24: #{ft_net_swinv2_head.1} parent=1 // pred_region
      _
    $region25: #{ft_net_swinv2_head.1} parent=1 // pred_fallthru
      _
    // Predicated region
    $region26: #{ft_net_swinv2_head.1} parent=1 // pred_check
      _
    $region27: #{ft_net_swinv2_head.1} parent=1 // pred_check_branch
      %2746 = sbr.rel (0) target = $region29
    $region28: #{ft_net_swinv2_head.1} parent=1 // pred_region
      _
    $region29: #{ft_net_swinv2_head.1} parent=1 // pred_fallthru
      _
    %2747 = vsyncpa [#allocation3], 1

</llo_original>
